<compile_context>
chip_gen: v7x
topology: tpu7x:2x2x1
jax: 0.10.0
libtpu: 0.0.40
codegen_flags: <defaults>
</compile_context>

<pallas_src>
import functools

import jax
import jax.numpy as jnp
from jax.experimental import pallas as pl
from jax.experimental.pallas import tpu as pltpu


def conv_block_fused_kernel(x_ref, w_ref, b_ref, gamma_ref, beta_ref, o_ref,
                            *, N, H, W, Cin, Cout, KH, KW, eps):
    """Fused: 3x3 conv (one im2col MXU matmul per image) + bias + ReLU +
    training-mode BatchNorm (batch stats + affine) + NCHW lane-dense store."""
    ph, pw = KH // 2, KW // 2
    w = w_ref[...]                                   # (KH*KW*Cin, Cout) bf16
    b = b_ref[...]                                   # (1, Cout) f32

    ys = []
    s_tot = jnp.zeros((1, Cout), jnp.float32)        # sum over batch*spatial
    q_tot = jnp.zeros((1, Cout), jnp.float32)        # sum of squares

    # N is tiny -> static unroll; each image is one MXU matmul with K = KH*KW*Cin.
    for n in range(N):
        x = x_ref[n]                                 # (H, W, Cin) bf16

        # ---- in-kernel zero padding (padding=1); no HBM pad pass ----
        zrow = jnp.zeros((ph, W, Cin), x.dtype)
        xpad = jnp.concatenate([zrow, x, zrow], axis=0)           # (H+2ph, W, Cin)
        zcol = jnp.zeros((H + 2 * ph, pw, Cin), x.dtype)
        xpad = jnp.concatenate([zcol, xpad, zcol], axis=1)        # (H+2ph, W+2pw, Cin)

        # ---- im2col slab: single matmul with K = KH*KW*Cin ----
        cols = [xpad[dy:dy + H, dx:dx + W, :].reshape(H * W, Cin)
                for dy in range(KH) for dx in range(KW)]
        im2col = jnp.concatenate(cols, axis=-1)                   # (H*W, KH*KW*Cin) bf16

        acc = jnp.dot(im2col, w, preferred_element_type=jnp.float32)  # (H*W, Cout) f32
        y = jnp.maximum(acc + b, 0.0)                             # bias + ReLU
        ys.append(y)

        s_tot = s_tot + jnp.sum(y, axis=0, keepdims=True)
        q_tot = q_tot + jnp.sum(y * y, axis=0, keepdims=True)

    # ---- BatchNorm2d training-mode statistics (biased variance) ----
    count = float(N * H * W)
    mean = s_tot / count                                          # (1, Cout)
    var = jnp.maximum(q_tot / count - mean * mean, 0.0)
    scale = gamma_ref[...] * jax.lax.rsqrt(var + eps)             # (1, Cout)
    shift = beta_ref[...] - mean * scale

    # ---- affine + fused NHWC->NCHW transpose, lane-dense (Cout, H*W) store ----
    for n in range(N):
        o_ref[n] = (ys[n] * scale + shift).T                      # (Cout, H*W) f32


def conv_block(x_nchw, w_oihw, b, gamma, beta, eps=1e-5):
    N, Cin, H, W = x_nchw.shape
    Cout, _, KH, KW = w_oihw.shape

    # ---- layout / dtype prep (input transpose + tiny per-channel reshapes only) ----
    x = jnp.transpose(x_nchw, (0, 2, 3, 1)).astype(jnp.bfloat16)          # NCHW -> NHWC
    w2 = (jnp.transpose(w_oihw, (2, 3, 1, 0))
          .reshape(KH * KW * Cin, Cout).astype(jnp.bfloat16))             # (9*Cin, Cout)
    b2 = b.reshape(1, Cout).astype(jnp.float32)
    g2 = gamma.reshape(1, Cout).astype(jnp.float32)
    be2 = beta.reshape(1, Cout).astype(jnp.float32)

    kern = functools.partial(conv_block_fused_kernel, N=N, H=H, W=W,
                             Cin=Cin, Cout=Cout, KH=KH, KW=KW, eps=eps)

    out = pl.pallas_call(
        kern,
        out_shape=jax.ShapeDtypeStruct((N, Cout, H * W), jnp.float32),
        grid_spec=pltpu.PrefetchScalarGridSpec(
            num_scalar_prefetch=0,
            grid=(1,),
            in_specs=[
                pl.BlockSpec((N, H, W, Cin), lambda i: (0, 0, 0, 0)),
                pl.BlockSpec((KH * KW * Cin, Cout), lambda i: (0, 0)),
                pl.BlockSpec((1, Cout), lambda i: (0, 0)),
                pl.BlockSpec((1, Cout), lambda i: (0, 0)),
                pl.BlockSpec((1, Cout), lambda i: (0, 0)),
            ],
            out_specs=pl.BlockSpec((N, Cout, H * W), lambda i: (0, 0, 0)),
        ),
        compiler_params=pltpu.CompilerParams(dimension_semantics=("arbitrary",)),
    )(x, w2, b2, g2, be2)

    return out.reshape(N, Cout, H, W)       # contiguous reshape only — no transpose pass


if __name__ == "__main__":
    N, Cin, H, W, Cout = 2, 4, 16, 16, 8
    key = jax.random.PRNGKey(0)
    k1, k2, k3 = jax.random.split(key, 3)

    x = jax.random.normal(k1, (N, Cin, H, W), jnp.float32)
    # deterministic Conv2d-style init (uniform in +-1/sqrt(fan_in))
    fan_in = Cin * 3 * 3
    bound = 1.0 / (fan_in ** 0.5)
    w = jax.random.uniform(k2, (Cout, Cin, 3, 3), jnp.float32, -bound, bound)
    b = jax.random.uniform(k3, (Cout,), jnp.float32, -bound, bound)
    # BatchNorm2d default affine params
    gamma = jnp.ones((Cout,), jnp.float32)
    beta = jnp.zeros((Cout,), jnp.float32)

    out = jax.block_until_ready(conv_block(x, w, b, gamma, beta))

    # pure-JAX reference for sanity
    yr = jax.lax.conv_general_dilated(
        x, w, (1, 1), ((1, 1), (1, 1)),
        dimension_numbers=("NCHW", "OIHW", "NCHW"),
        precision=jax.lax.Precision.HIGHEST)
    yr = jnp.maximum(yr + b.reshape(1, Cout, 1, 1), 0.0)
    mu = yr.mean(axis=(0, 2, 3), keepdims=True)
    va = yr.var(axis=(0, 2, 3), keepdims=True)
    ref = (yr - mu) * jax.lax.rsqrt(va + 1e-5) * gamma.reshape(1, Cout, 1, 1) \
          + beta.reshape(1, Cout, 1, 1)

    assert out.shape == (N, Cout, H, W)
    assert jnp.allclose(out, ref, atol=5e-2, rtol=5e-2), \
        float(jnp.max(jnp.abs(out - ref)))
    print("KERNEL_OK")
</pallas_src>

<mosaic_0001>
module attributes {stable_mosaic.version = 11 : i64} {
  func.func @conv_block_fused_kernel(%arg0: i32, %arg1: memref<2x16x16x4xbf16, #tpu.memory_space<vmem>>, %arg2: memref<36x8xbf16, #tpu.memory_space<vmem>>, %arg3: memref<1x8xf32, #tpu.memory_space<vmem>>, %arg4: memref<1x8xf32, #tpu.memory_space<vmem>>, %arg5: memref<1x8xf32, #tpu.memory_space<vmem>>, %arg6: memref<2x8x256xf32, #tpu.memory_space<vmem>>) attributes {dimension_semantics = [#tpu.dimension_semantics<arbitrary>], iteration_bounds = array<i64: 1>, scalar_prefetch = 0 : i64, scratch_operands = 0 : i64, tpu.core_type = #tpu.core_type<tc>, window_params = [{pipeline_mode = #tpu.pipeline_mode<synchronous>, transform_indices = @transform_0, window_bounds = array<i64: 2, 16, 16, 4>}, {pipeline_mode = #tpu.pipeline_mode<synchronous>, transform_indices = @transform_1, window_bounds = array<i64: 36, 8>}, {pipeline_mode = #tpu.pipeline_mode<synchronous>, transform_indices = @transform_2, window_bounds = array<i64: 1, 8>}, {pipeline_mode = #tpu.pipeline_mode<synchronous>, transform_indices = @transform_3, window_bounds = array<i64: 1, 8>}, {pipeline_mode = #tpu.pipeline_mode<synchronous>, transform_indices = @transform_4, window_bounds = array<i64: 1, 8>}, {pipeline_mode = #tpu.pipeline_mode<synchronous>, transform_indices = @transform_5, window_bounds = array<i64: 2, 8, 256>}]} {
    %c0 = arith.constant 0 : index
    %c0_0 = arith.constant 0 : index
    %0 = vector.load %arg2[%c0, %c0_0] : memref<36x8xbf16, #tpu.memory_space<vmem>>, vector<36x8xbf16>
    %c0_1 = arith.constant 0 : index
    %c0_2 = arith.constant 0 : index
    %1 = vector.load %arg3[%c0_1, %c0_2] : memref<1x8xf32, #tpu.memory_space<vmem>>, vector<1x8xf32>
    %cst = arith.constant 0.000000e+00 : f32
    %2 = vector.broadcast %cst : f32 to vector<1x8xf32>
    %cst_3 = arith.constant 0.000000e+00 : f32
    %3 = vector.broadcast %cst_3 : f32 to vector<1x8xf32>
    %c0_4 = arith.constant 0 : index
    %c0_5 = arith.constant 0 : index
    %c0_6 = arith.constant 0 : index
    %c0_7 = arith.constant 0 : index
    %4 = vector.load %arg1[%c0_4, %c0_5, %c0_6, %c0_7] : memref<2x16x16x4xbf16, #tpu.memory_space<vmem>>, vector<1x16x16x4xbf16>
    %5 = vector.shape_cast %4 : vector<1x16x16x4xbf16> to vector<16x16x4xbf16>
    %cst_8 = arith.constant 0.000000e+00 : bf16
    %6 = vector.broadcast %cst_8 : bf16 to vector<1x16x4xbf16>
    %7 = tpu.concatenate %6, %5, %6 in 0 : vector<1x16x4xbf16>, vector<16x16x4xbf16>, vector<1x16x4xbf16> -> vector<18x16x4xbf16>
    %cst_9 = arith.constant 0.000000e+00 : bf16
    %8 = vector.broadcast %cst_9 : bf16 to vector<18x1x4xbf16>
    %9 = tpu.concatenate %8, %7, %8 in 1 : vector<18x1x4xbf16>, vector<18x16x4xbf16>, vector<18x1x4xbf16> -> vector<18x18x4xbf16>
    %10 = vector.extract_strided_slice %9 {offsets = [0, 0, 0], sizes = [16, 16, 4], strides = [1, 1, 1]} : vector<18x18x4xbf16> to vector<16x16x4xbf16>
    %11 = vector.shape_cast %10 : vector<16x16x4xbf16> to vector<256x4xbf16>
    %12 = vector.extract_strided_slice %9 {offsets = [0, 1, 0], sizes = [16, 16, 4], strides = [1, 1, 1]} : vector<18x18x4xbf16> to vector<16x16x4xbf16>
    %13 = vector.shape_cast %12 : vector<16x16x4xbf16> to vector<256x4xbf16>
    %14 = vector.extract_strided_slice %9 {offsets = [0, 2, 0], sizes = [16, 16, 4], strides = [1, 1, 1]} : vector<18x18x4xbf16> to vector<16x16x4xbf16>
    %15 = vector.shape_cast %14 : vector<16x16x4xbf16> to vector<256x4xbf16>
    %16 = vector.extract_strided_slice %9 {offsets = [1, 0, 0], sizes = [16, 16, 4], strides = [1, 1, 1]} : vector<18x18x4xbf16> to vector<16x16x4xbf16>
    %17 = vector.shape_cast %16 : vector<16x16x4xbf16> to vector<256x4xbf16>
    %18 = vector.extract_strided_slice %9 {offsets = [1, 1, 0], sizes = [16, 16, 4], strides = [1, 1, 1]} : vector<18x18x4xbf16> to vector<16x16x4xbf16>
    %19 = vector.shape_cast %18 : vector<16x16x4xbf16> to vector<256x4xbf16>
    %20 = vector.extract_strided_slice %9 {offsets = [1, 2, 0], sizes = [16, 16, 4], strides = [1, 1, 1]} : vector<18x18x4xbf16> to vector<16x16x4xbf16>
    %21 = vector.shape_cast %20 : vector<16x16x4xbf16> to vector<256x4xbf16>
    %22 = vector.extract_strided_slice %9 {offsets = [2, 0, 0], sizes = [16, 16, 4], strides = [1, 1, 1]} : vector<18x18x4xbf16> to vector<16x16x4xbf16>
    %23 = vector.shape_cast %22 : vector<16x16x4xbf16> to vector<256x4xbf16>
    %24 = vector.extract_strided_slice %9 {offsets = [2, 1, 0], sizes = [16, 16, 4], strides = [1, 1, 1]} : vector<18x18x4xbf16> to vector<16x16x4xbf16>
    %25 = vector.shape_cast %24 : vector<16x16x4xbf16> to vector<256x4xbf16>
    %26 = vector.extract_strided_slice %9 {offsets = [2, 2, 0], sizes = [16, 16, 4], strides = [1, 1, 1]} : vector<18x18x4xbf16> to vector<16x16x4xbf16>
    %27 = vector.shape_cast %26 : vector<16x16x4xbf16> to vector<256x4xbf16>
    %28 = tpu.concatenate %11, %13, %15, %17, %19, %21, %23, %25, %27 in 1 : vector<256x4xbf16>, vector<256x4xbf16>, vector<256x4xbf16>, vector<256x4xbf16>, vector<256x4xbf16>, vector<256x4xbf16>, vector<256x4xbf16>, vector<256x4xbf16>, vector<256x4xbf16> -> vector<256x36xbf16>
    %cst_10 = arith.constant dense<0.000000e+00> : vector<256x8xf32>
    %29 = tpu.matmul %28, %0, %cst_10 {dimension_numbers = #tpu.dot_dimension_numbers<[1], [0], [0], [1], [0, 0, 1, 1], [], []>} : vector<256x36xbf16>, vector<36x8xbf16>, vector<256x8xf32> -> vector<256x8xf32>
    %30 = vector.broadcast %1 : vector<1x8xf32> to vector<256x8xf32>
    %31 = arith.addf %29, %30 : vector<256x8xf32>
    %cst_11 = arith.constant 0.000000e+00 : f32
    %32 = vector.broadcast %cst_11 : f32 to vector<256x8xf32>
    %33 = arith.maximumf %31, %32 : vector<256x8xf32>
    %cst_12 = arith.constant dense<0.000000e+00> : vector<8xf32>
    %34 = vector.multi_reduction <add>, %33, %cst_12 [0] : vector<256x8xf32> to vector<8xf32>
    %35 = vector.shape_cast %34 : vector<8xf32> to vector<1x8xf32>
    %36 = arith.addf %2, %35 : vector<1x8xf32>
    %37 = arith.mulf %33, %33 : vector<256x8xf32>
    %cst_13 = arith.constant dense<0.000000e+00> : vector<8xf32>
    %38 = vector.multi_reduction <add>, %37, %cst_13 [0] : vector<256x8xf32> to vector<8xf32>
    %39 = vector.shape_cast %38 : vector<8xf32> to vector<1x8xf32>
    %40 = arith.addf %3, %39 : vector<1x8xf32>
    %c1 = arith.constant 1 : index
    %c0_14 = arith.constant 0 : index
    %c0_15 = arith.constant 0 : index
    %c0_16 = arith.constant 0 : index
    %41 = vector.load %arg1[%c1, %c0_14, %c0_15, %c0_16] : memref<2x16x16x4xbf16, #tpu.memory_space<vmem>>, vector<1x16x16x4xbf16>
    %42 = vector.shape_cast %41 : vector<1x16x16x4xbf16> to vector<16x16x4xbf16>
    %cst_17 = arith.constant 0.000000e+00 : bf16
    %43 = vector.broadcast %cst_17 : bf16 to vector<1x16x4xbf16>
    %44 = tpu.concatenate %43, %42, %43 in 0 : vector<1x16x4xbf16>, vector<16x16x4xbf16>, vector<1x16x4xbf16> -> vector<18x16x4xbf16>
    %cst_18 = arith.constant 0.000000e+00 : bf16
    %45 = vector.broadcast %cst_18 : bf16 to vector<18x1x4xbf16>
    %46 = tpu.concatenate %45, %44, %45 in 1 : vector<18x1x4xbf16>, vector<18x16x4xbf16>, vector<18x1x4xbf16> -> vector<18x18x4xbf16>
    %47 = vector.extract_strided_slice %46 {offsets = [0, 0, 0], sizes = [16, 16, 4], strides = [1, 1, 1]} : vector<18x18x4xbf16> to vector<16x16x4xbf16>
    %48 = vector.shape_cast %47 : vector<16x16x4xbf16> to vector<256x4xbf16>
    %49 = vector.extract_strided_slice %46 {offsets = [0, 1, 0], sizes = [16, 16, 4], strides = [1, 1, 1]} : vector<18x18x4xbf16> to vector<16x16x4xbf16>
    %50 = vector.shape_cast %49 : vector<16x16x4xbf16> to vector<256x4xbf16>
    %51 = vector.extract_strided_slice %46 {offsets = [0, 2, 0], sizes = [16, 16, 4], strides = [1, 1, 1]} : vector<18x18x4xbf16> to vector<16x16x4xbf16>
    %52 = vector.shape_cast %51 : vector<16x16x4xbf16> to vector<256x4xbf16>
    %53 = vector.extract_strided_slice %46 {offsets = [1, 0, 0], sizes = [16, 16, 4], strides = [1, 1, 1]} : vector<18x18x4xbf16> to vector<16x16x4xbf16>
    %54 = vector.shape_cast %53 : vector<16x16x4xbf16> to vector<256x4xbf16>
    %55 = vector.extract_strided_slice %46 {offsets = [1, 1, 0], sizes = [16, 16, 4], strides = [1, 1, 1]} : vector<18x18x4xbf16> to vector<16x16x4xbf16>
    %56 = vector.shape_cast %55 : vector<16x16x4xbf16> to vector<256x4xbf16>
    %57 = vector.extract_strided_slice %46 {offsets = [1, 2, 0], sizes = [16, 16, 4], strides = [1, 1, 1]} : vector<18x18x4xbf16> to vector<16x16x4xbf16>
    %58 = vector.shape_cast %57 : vector<16x16x4xbf16> to vector<256x4xbf16>
    %59 = vector.extract_strided_slice %46 {offsets = [2, 0, 0], sizes = [16, 16, 4], strides = [1, 1, 1]} : vector<18x18x4xbf16> to vector<16x16x4xbf16>
    %60 = vector.shape_cast %59 : vector<16x16x4xbf16> to vector<256x4xbf16>
    %61 = vector.extract_strided_slice %46 {offsets = [2, 1, 0], sizes = [16, 16, 4], strides = [1, 1, 1]} : vector<18x18x4xbf16> to vector<16x16x4xbf16>
    %62 = vector.shape_cast %61 : vector<16x16x4xbf16> to vector<256x4xbf16>
    %63 = vector.extract_strided_slice %46 {offsets = [2, 2, 0], sizes = [16, 16, 4], strides = [1, 1, 1]} : vector<18x18x4xbf16> to vector<16x16x4xbf16>
    %64 = vector.shape_cast %63 : vector<16x16x4xbf16> to vector<256x4xbf16>
    %65 = tpu.concatenate %48, %50, %52, %54, %56, %58, %60, %62, %64 in 1 : vector<256x4xbf16>, vector<256x4xbf16>, vector<256x4xbf16>, vector<256x4xbf16>, vector<256x4xbf16>, vector<256x4xbf16>, vector<256x4xbf16>, vector<256x4xbf16>, vector<256x4xbf16> -> vector<256x36xbf16>
    %cst_19 = arith.constant dense<0.000000e+00> : vector<256x8xf32>
    %66 = tpu.matmul %65, %0, %cst_19 {dimension_numbers = #tpu.dot_dimension_numbers<[1], [0], [0], [1], [0, 0, 1, 1], [], []>} : vector<256x36xbf16>, vector<36x8xbf16>, vector<256x8xf32> -> vector<256x8xf32>
    %67 = vector.broadcast %1 : vector<1x8xf32> to vector<256x8xf32>
    %68 = arith.addf %66, %67 : vector<256x8xf32>
    %cst_20 = arith.constant 0.000000e+00 : f32
    %69 = vector.broadcast %cst_20 : f32 to vector<256x8xf32>
    %70 = arith.maximumf %68, %69 : vector<256x8xf32>
    %cst_21 = arith.constant dense<0.000000e+00> : vector<8xf32>
    %71 = vector.multi_reduction <add>, %70, %cst_21 [0] : vector<256x8xf32> to vector<8xf32>
    %72 = vector.shape_cast %71 : vector<8xf32> to vector<1x8xf32>
    %73 = arith.addf %36, %72 : vector<1x8xf32>
    %74 = arith.mulf %70, %70 : vector<256x8xf32>
    %cst_22 = arith.constant dense<0.000000e+00> : vector<8xf32>
    %75 = vector.multi_reduction <add>, %74, %cst_22 [0] : vector<256x8xf32> to vector<8xf32>
    %76 = vector.shape_cast %75 : vector<8xf32> to vector<1x8xf32>
    %77 = arith.addf %40, %76 : vector<1x8xf32>
    %cst_23 = arith.constant 5.120000e+02 : f32
    %78 = vector.broadcast %cst_23 : f32 to vector<1x8xf32>
    %79 = arith.divf %73, %78 : vector<1x8xf32>
    %cst_24 = arith.constant 5.120000e+02 : f32
    %80 = vector.broadcast %cst_24 : f32 to vector<1x8xf32>
    %81 = arith.divf %77, %80 : vector<1x8xf32>
    %82 = arith.mulf %79, %79 : vector<1x8xf32>
    %83 = arith.subf %81, %82 : vector<1x8xf32>
    %cst_25 = arith.constant 0.000000e+00 : f32
    %84 = vector.broadcast %cst_25 : f32 to vector<1x8xf32>
    %85 = arith.maximumf %83, %84 : vector<1x8xf32>
    %c0_26 = arith.constant 0 : index
    %c0_27 = arith.constant 0 : index
    %86 = vector.load %arg4[%c0_26, %c0_27] : memref<1x8xf32, #tpu.memory_space<vmem>>, vector<1x8xf32>
    %cst_28 = arith.constant 9.99999974E-6 : f32
    %87 = vector.broadcast %cst_28 : f32 to vector<1x8xf32>
    %88 = arith.addf %85, %87 : vector<1x8xf32>
    %89 = math.rsqrt %88 : vector<1x8xf32>
    %90 = arith.mulf %86, %89 : vector<1x8xf32>
    %c0_29 = arith.constant 0 : index
    %c0_30 = arith.constant 0 : index
    %91 = vector.load %arg5[%c0_29, %c0_30] : memref<1x8xf32, #tpu.memory_space<vmem>>, vector<1x8xf32>
    %92 = arith.mulf %79, %90 : vector<1x8xf32>
    %93 = arith.subf %91, %92 : vector<1x8xf32>
    %94 = vector.broadcast %90 : vector<1x8xf32> to vector<256x8xf32>
    %95 = arith.mulf %33, %94 : vector<256x8xf32>
    %96 = vector.broadcast %93 : vector<1x8xf32> to vector<256x8xf32>
    %97 = arith.addf %95, %96 : vector<256x8xf32>
    %98 = tpu.transpose %97, [1, 0] : vector<256x8xf32> -> vector<8x256xf32>
    %c0_31 = arith.constant 0 : index
    %c0_32 = arith.constant 0 : index
    %c0_33 = arith.constant 0 : index
    %99 = vector.load %arg6[%c0_31, %c0_32, %c0_33] : memref<2x8x256xf32, #tpu.memory_space<vmem>>, vector<1x8x256xf32>
    %100 = vector.shape_cast %99 : vector<1x8x256xf32> to vector<8x256xf32>
    %101 = vector.shape_cast %98 : vector<8x256xf32> to vector<1x8x256xf32>
    tpu.vector_store %arg6[%c0_31, %c0_32, %c0_33], %101 {strides = array<i32>} : memref<2x8x256xf32, #tpu.memory_space<vmem>>, vector<1x8x256xf32>,
    %102 = vector.broadcast %90 : vector<1x8xf32> to vector<256x8xf32>
    %103 = arith.mulf %70, %102 : vector<256x8xf32>
    %104 = vector.broadcast %93 : vector<1x8xf32> to vector<256x8xf32>
    %105 = arith.addf %103, %104 : vector<256x8xf32>
    %106 = tpu.transpose %105, [1, 0] : vector<256x8xf32> -> vector<8x256xf32>
    %c1_34 = arith.constant 1 : index
    %c0_35 = arith.constant 0 : index
    %c0_36 = arith.constant 0 : index
    %107 = vector.load %arg6[%c1_34, %c0_35, %c0_36] : memref<2x8x256xf32, #tpu.memory_space<vmem>>, vector<1x8x256xf32>
    %108 = vector.shape_cast %107 : vector<1x8x256xf32> to vector<8x256xf32>
    %109 = vector.shape_cast %106 : vector<8x256xf32> to vector<1x8x256xf32>
    tpu.vector_store %arg6[%c1_34, %c0_35, %c0_36], %109 {strides = array<i32>} : memref<2x8x256xf32, #tpu.memory_space<vmem>>, vector<1x8x256xf32>,
    return
  }
  func.func @transform_0(%arg0: i32) -> (i32, i32, i32, i32) {
    %c0_i32 = arith.constant 0 : i32
    %c0_i32_0 = arith.constant 0 : i32
    %c0_i32_1 = arith.constant 0 : i32
    %c0_i32_2 = arith.constant 0 : i32
    %c0_i32_3 = arith.constant 0 : i32
    return %c0_i32, %c0_i32_0, %c0_i32_1, %c0_i32_2 : i32, i32, i32, i32
  }
  func.func @transform_1(%arg0: i32) -> (i32, i32) {
    %c0_i32 = arith.constant 0 : i32
    %c0_i32_0 = arith.constant 0 : i32
    %c0_i32_1 = arith.constant 0 : i32
    return %c0_i32, %c0_i32_0 : i32, i32
  }
  func.func @transform_2(%arg0: i32) -> (i32, i32) {
    %c0_i32 = arith.constant 0 : i32
    %c0_i32_0 = arith.constant 0 : i32
    %c0_i32_1 = arith.constant 0 : i32
    return %c0_i32, %c0_i32_0 : i32, i32
  }
  func.func @transform_3(%arg0: i32) -> (i32, i32) {
    %c0_i32 = arith.constant 0 : i32
    %c0_i32_0 = arith.constant 0 : i32
    %c0_i32_1 = arith.constant 0 : i32
    return %c0_i32, %c0_i32_0 : i32, i32
  }
  func.func @transform_4(%arg0: i32) -> (i32, i32) {
    %c0_i32 = arith.constant 0 : i32
    %c0_i32_0 = arith.constant 0 : i32
    %c0_i32_1 = arith.constant 0 : i32
    return %c0_i32, %c0_i32_0 : i32, i32
  }
  func.func @transform_5(%arg0: i32) -> (i32, i32, i32) {
    %c0_i32 = arith.constant 0 : i32
    %c0_i32_0 = arith.constant 0 : i32
    %c0_i32_1 = arith.constant 0 : i32
    %c0_i32_2 = arith.constant 0 : i32
    return %c0_i32, %c0_i32_0, %c0_i32_1 : i32, i32, i32
  }
}

</mosaic_0001>

<llo_original>
// kernel: tpu_custom_call.1
$region0: #{tpu_custom_call.1}
  #allocation0 [shape = 'u32[]', space=smem, size = 0x4, offset = 0x4, fixed_abs, tag = 'smem constant byte address 0x4 - core index']
  #allocation1 [shape = 'u32[144,128]{1,0:T(1,128)}', space=vmem, size = 0x12000, scoped, tag = 'internal scratch']
  %s0 = inlined_call_operand.vmem [shape: bf16[2,16,16,4], index: 0, kind: input, shape index: {}]
  %s1 = inlined_call_operand.vmem [shape: bf16[36,8], index: 1, kind: input, shape index: {}]
  %s2 = inlined_call_operand.vmem [shape: f32[1,8], index: 2, kind: input, shape index: {}]
  %s3 = inlined_call_operand.vmem [shape: f32[1,8], index: 3, kind: input, shape index: {}]
  %s4 = inlined_call_operand.vmem [shape: f32[1,8], index: 4, kind: input, shape index: {}]
  %s5 = inlined_call_operand.hbm [shape: f32[2,8,256], index: 5, kind: output, shape index: {}]
  %s6 = sld [smem:[#allocation0]]
  $region30: #{tpu_custom_call.1} parent=0
    _
  %s8 = ssub.s32 1, %s6
  %s9 = scalar_select 0, %s8, %s6
  $region1: #{tpu_custom_call.1} parent=0
    #allocation2 [shape = 'u8[16384]{0}', space=vmem, size = 0x4000, scoped, tag = 'output window, operand 0, single buffered']
    #allocation3 [shape = 's32[1]{0}', space=sflag, size = 0x4, scoped, tag = 'scoped memory for tpu_custom_call.1']
    %10 = vsyncpa [#allocation3], 0
    // Predicated region
    $region2: #{tpu_custom_call.1} parent=1 // pred_check
      _
    $region3: #{tpu_custom_call.1} parent=1 // pred_check_branch
      %12 = sbr.rel (0) target = $region5
    $region4: #{tpu_custom_call.1} parent=1 // pred_region
      _
    $region5: #{tpu_custom_call.1} parent=1 // pred_fallthru
      _
    // Predicated region
    $region6: #{tpu_custom_call.1} parent=1 // pred_check
      _
    $region7: #{tpu_custom_call.1} parent=1 // pred_check_branch
      %14 = sbr.rel (0) target = $region9
    $region8: #{tpu_custom_call.1} parent=1 // pred_region
      _
    $region9: #{tpu_custom_call.1} parent=1 // pred_fallthru
      _
    // Predicated region
    $region10: #{tpu_custom_call.1} parent=1 // pred_check
      _
    $region11: #{tpu_custom_call.1} parent=1 // pred_check_branch
      %16 = sbr.rel (0) target = $region13
    $region12: #{tpu_custom_call.1} parent=1 // pred_region
      _
    $region13: #{tpu_custom_call.1} parent=1 // pred_fallthru
      _
    // Predicated region
    $region14: #{tpu_custom_call.1} parent=1 // pred_check
      _
    $region15: #{tpu_custom_call.1} parent=1 // pred_check_branch
      %18 = sbr.rel (0) target = $region17
    $region16: #{tpu_custom_call.1} parent=1 // pred_region
      _
    $region17: #{tpu_custom_call.1} parent=1 // pred_fallthru
      _
    // Predicated region
    $region18: #{tpu_custom_call.1} parent=1 // pred_check
      _
    $region19: #{tpu_custom_call.1} parent=1 // pred_check_branch
      %20 = sbr.rel (0) target = $region21
    $region20: #{tpu_custom_call.1} parent=1 // pred_region
      _
    $region21: #{tpu_custom_call.1} parent=1 // pred_fallthru
      _
    %v22 = vld [vmem:[%s1] sm:$0xf]
    %v23 = vld [vmem:[%s1 + $0x4] sm:$0xf]
    %v24 = vld [vmem:[%s1 + $0x8] sm:$0xf]
    %v25 = vld [vmem:[%s1 + $0xc] sm:$0xf]
    %v26 = vld [vmem:[%s1 + $0x10] sm:$0x3]
    %v27 = vld [vmem:[%s2] sm:$0x1]
    %v28 = vld [vmem:[%s0] sm:$0xf]
    %v29 = vld [vmem:[%s0 + $0x4] sm:$0xf]
    %v30 = vld [vmem:[%s0 + $0x8] sm:$0xf]
    %v31 = vld [vmem:[%s0 + $0xc] sm:$0xf]
    %v32 = vld [vmem:[%s0 + $0x10] sm:$0xf]
    %v33 = vld [vmem:[%s0 + $0x14] sm:$0xf]
    %v34 = vld [vmem:[%s0 + $0x18] sm:$0xf]
    %v35 = vld [vmem:[%s0 + $0x1c] sm:$0xf]
    %v36 = vld [vmem:[%s0 + $0x20] sm:$0xf]
    %v37 = vld [vmem:[%s0 + $0x24] sm:$0xf]
    %v38 = vld [vmem:[%s0 + $0x28] sm:$0xf]
    %v39 = vld [vmem:[%s0 + $0x2c] sm:$0xf]
    %v40 = vld [vmem:[%s0 + $0x30] sm:$0xf]
    %v41 = vld [vmem:[%s0 + $0x34] sm:$0xf]
    %v42 = vld [vmem:[%s0 + $0x38] sm:$0xf]
    %v43 = vld [vmem:[%s0 + $0x3c] sm:$0xf]
    %v44 = vld [vmem:[%s0 + $0x40] sm:$0xf]
    %v45 = vld [vmem:[%s0 + $0x44] sm:$0xf]
    %v46 = vld [vmem:[%s0 + $0x48] sm:$0xf]
    %v47 = vld [vmem:[%s0 + $0x4c] sm:$0xf]
    %v48 = vld [vmem:[%s0 + $0x50] sm:$0xf]
    %v49 = vld [vmem:[%s0 + $0x54] sm:$0xf]
    %v50 = vld [vmem:[%s0 + $0x58] sm:$0xf]
    %v51 = vld [vmem:[%s0 + $0x5c] sm:$0xf]
    %v52 = vld [vmem:[%s0 + $0x60] sm:$0xf]
    %v53 = vld [vmem:[%s0 + $0x64] sm:$0xf]
    %v54 = vld [vmem:[%s0 + $0x68] sm:$0xf]
    %v55 = vld [vmem:[%s0 + $0x6c] sm:$0xf]
    %v56 = vld [vmem:[%s0 + $0x70] sm:$0xf]
    %v57 = vld [vmem:[%s0 + $0x74] sm:$0xf]
    %v58 = vld [vmem:[%s0 + $0x78] sm:$0xf]
    %v59 = vld [vmem:[%s0 + $0x7c] sm:$0xf]
    %v92 = vunpack.c.l.b16 %v28
    %v93 = vunpack.c.l.b16 %v29
    %v94 = vunpack.c.l.b16 %v30
    %v95 = vunpack.c.l.b16 %v31
    %v96 = vunpack.c.l.b16 %v32
    %v97 = vunpack.c.l.b16 %v33
    %v98 = vunpack.c.l.b16 %v34
    %v99 = vunpack.c.l.b16 %v35
    %v100 = vunpack.c.l.b16 %v36
    %v101 = vunpack.c.l.b16 %v37
    %v102 = vunpack.c.l.b16 %v38
    %v103 = vunpack.c.l.b16 %v39
    %v104 = vunpack.c.l.b16 %v40
    %v105 = vunpack.c.l.b16 %v41
    %v106 = vunpack.c.l.b16 %v42
    %v107 = vunpack.c.l.b16 %v43
    %v108 = vunpack.c.l.b16 %v44
    %v109 = vunpack.c.l.b16 %v45
    %v110 = vunpack.c.l.b16 %v46
    %v111 = vunpack.c.l.b16 %v47
    %v112 = vunpack.c.l.b16 %v48
    %v113 = vunpack.c.l.b16 %v49
    %v114 = vunpack.c.l.b16 %v50
    %v115 = vunpack.c.l.b16 %v51
    %v116 = vunpack.c.l.b16 %v52
    %v117 = vunpack.c.l.b16 %v53
    %v118 = vunpack.c.l.b16 %v54
    %v119 = vunpack.c.l.b16 %v55
    %v120 = vunpack.c.l.b16 %v56
    %v121 = vunpack.c.l.b16 %v57
    %v122 = vunpack.c.l.b16 %v58
    %v123 = vunpack.c.l.b16 %v59
    %v124 = vpack.c.b16 %v93, %v92
    %v125 = vpack.c.b16 %v95, %v94
    %v126 = vpack.c.b16 %v97, %v96
    %v127 = vpack.c.b16 %v99, %v98
    %v128 = vpack.c.b16 %v101, %v100
    %v129 = vpack.c.b16 %v103, %v102
    %v130 = vpack.c.b16 %v105, %v104
    %v131 = vpack.c.b16 %v107, %v106
    %v132 = vpack.c.b16 %v109, %v108
    %v133 = vpack.c.b16 %v111, %v110
    %v134 = vpack.c.b16 %v113, %v112
    %v135 = vpack.c.b16 %v115, %v114
    %v136 = vpack.c.b16 %v117, %v116
    %v137 = vpack.c.b16 %v119, %v118
    %v138 = vpack.c.b16 %v121, %v120
    %v139 = vpack.c.b16 %v123, %v122
    %v141 = vshrl.u32 0, 16
    %v143 = vrot.slane %v141, 7
    %v144 = vshll.u32 0, 16
    %v146 = vor.u32 %v143, %v144
    %v148 = vshrl.u32 %v124, 16
    %v150 = vrot.slane %v148, 7
    %v151 = vshll.u32 %v124, 16
    %v153 = vor.u32 %v150, %v151
    %v155 = vshrl.u32 %v125, 16
    %v157 = vrot.slane %v155, 7
    %v158 = vshll.u32 %v125, 16
    %v160 = vor.u32 %v157, %v158
    %v162 = vshrl.u32 %v126, 16
    %v164 = vrot.slane %v162, 7
    %v165 = vshll.u32 %v126, 16
    %v167 = vor.u32 %v164, %v165
    %v169 = vshrl.u32 %v127, 16
    %v171 = vrot.slane %v169, 7
    %v172 = vshll.u32 %v127, 16
    %v174 = vor.u32 %v171, %v172
    %v176 = vshrl.u32 %v128, 16
    %v178 = vrot.slane %v176, 7
    %v179 = vshll.u32 %v128, 16
    %v181 = vor.u32 %v178, %v179
    %v183 = vshrl.u32 %v129, 16
    %v185 = vrot.slane %v183, 7
    %v186 = vshll.u32 %v129, 16
    %v188 = vor.u32 %v185, %v186
    %v190 = vshrl.u32 %v130, 16
    %v192 = vrot.slane %v190, 7
    %v193 = vshll.u32 %v130, 16
    %v195 = vor.u32 %v192, %v193
    %v197 = vshrl.u32 %v131, 16
    %v199 = vrot.slane %v197, 7
    %v200 = vshll.u32 %v131, 16
    %v202 = vor.u32 %v199, %v200
    %v204 = vshrl.u32 %v132, 16
    %v206 = vrot.slane %v204, 7
    %v207 = vshll.u32 %v132, 16
    %v209 = vor.u32 %v206, %v207
    %v211 = vshrl.u32 %v133, 16
    %v213 = vrot.slane %v211, 7
    %v214 = vshll.u32 %v133, 16
    %v216 = vor.u32 %v213, %v214
    %v218 = vshrl.u32 %v134, 16
    %v220 = vrot.slane %v218, 7
    %v221 = vshll.u32 %v134, 16
    %v223 = vor.u32 %v220, %v221
    %v225 = vshrl.u32 %v135, 16
    %v227 = vrot.slane %v225, 7
    %v228 = vshll.u32 %v135, 16
    %v230 = vor.u32 %v227, %v228
    %v232 = vshrl.u32 %v136, 16
    %v234 = vrot.slane %v232, 7
    %v235 = vshll.u32 %v136, 16
    %v237 = vor.u32 %v234, %v235
    %v239 = vshrl.u32 %v137, 16
    %v241 = vrot.slane %v239, 7
    %v242 = vshll.u32 %v137, 16
    %v244 = vor.u32 %v241, %v242
    %v246 = vshrl.u32 %v138, 16
    %v248 = vrot.slane %v246, 7
    %v249 = vshll.u32 %v138, 16
    %v251 = vor.u32 %v248, %v249
    %v253 = vshrl.u32 %v139, 16
    %v255 = vrot.slane %v253, 7
    %v256 = vshll.u32 %v139, 16
    %v258 = vor.u32 %v255, %v256
    %vm293 = vcmask 1040384
    %vm294 = vsmask.f32 256
    %vm295 = vmand %vm293, %vm294
    %v296 = vsel %vm295, 0, %v146
    %v297 = vsel %vm295, 0, %v153
    %v298 = vsel %vm295, 0, %v160
    %v299 = vsel %vm295, 0, %v167
    %v300 = vsel %vm295, 0, %v174
    %v301 = vsel %vm295, 0, %v181
    %v302 = vsel %vm295, 0, %v188
    %v303 = vsel %vm295, 0, %v195
    %v304 = vsel %vm295, 0, %v202
    %v305 = vsel %vm295, 0, %v209
    %v306 = vsel %vm295, 0, %v216
    %v307 = vsel %vm295, 0, %v223
    %v308 = vsel %vm295, 0, %v230
    %v309 = vsel %vm295, 0, %v237
    %v310 = vsel %vm295, 0, %v244
    %v311 = vsel %vm295, 0, %v251
    %v312 = vsel %vm295, 0, %v258
    %v313 = vsel %vm295, %v143, 0
    %v314 = vsel %vm295, %v150, 0
    %v315 = vsel %vm295, %v157, 0
    %v316 = vsel %vm295, %v164, 0
    %v317 = vsel %vm295, %v171, 0
    %v318 = vsel %vm295, %v178, 0
    %v319 = vsel %vm295, %v185, 0
    %v320 = vsel %vm295, %v192, 0
    %v321 = vsel %vm295, %v199, 0
    %v322 = vsel %vm295, %v206, 0
    %v323 = vsel %vm295, %v213, 0
    %v324 = vsel %vm295, %v220, 0
    %v325 = vsel %vm295, %v227, 0
    %v326 = vsel %vm295, %v234, 0
    %v327 = vsel %vm295, %v241, 0
    %v328 = vsel %vm295, %v248, 0
    %v329 = vsel %vm295, %v255, 0
    %vm330 = vsmask.f32 7424
    %v332 = vshrl.u32 %v296, 16
    %v334 = vshll.u32 %v296, 16
    %v336 = vrot.slane %v334, 1
    %v337 = vor.u32 %v332, %v336
    %v339 = vshll.u32 %v313, 16
    %v341 = vrot.slane %v339, 1
    %v342 = vsel %vm330, %v337, %v341
    %v344 = vshrl.u32 %v297, 16
    %v346 = vshll.u32 %v297, 16
    %v348 = vrot.slane %v346, 1
    %v349 = vor.u32 %v344, %v348
    %v351 = vshll.u32 %v314, 16
    %v353 = vrot.slane %v351, 1
    %v354 = vsel %vm330, %v349, %v353
    %v356 = vshrl.u32 %v298, 16
    %v358 = vshll.u32 %v298, 16
    %v360 = vrot.slane %v358, 1
    %v361 = vor.u32 %v356, %v360
    %v363 = vshll.u32 %v315, 16
    %v365 = vrot.slane %v363, 1
    %v366 = vsel %vm330, %v361, %v365
    %v368 = vshrl.u32 %v299, 16
    %v370 = vshll.u32 %v299, 16
    %v372 = vrot.slane %v370, 1
    %v373 = vor.u32 %v368, %v372
    %v375 = vshll.u32 %v316, 16
    %v377 = vrot.slane %v375, 1
    %v378 = vsel %vm330, %v373, %v377
    %v380 = vshrl.u32 %v300, 16
    %v382 = vshll.u32 %v300, 16
    %v384 = vrot.slane %v382, 1
    %v385 = vor.u32 %v380, %v384
    %v387 = vshll.u32 %v317, 16
    %v389 = vrot.slane %v387, 1
    %v390 = vsel %vm330, %v385, %v389
    %v392 = vshrl.u32 %v301, 16
    %v394 = vshll.u32 %v301, 16
    %v396 = vrot.slane %v394, 1
    %v397 = vor.u32 %v392, %v396
    %v399 = vshll.u32 %v318, 16
    %v401 = vrot.slane %v399, 1
    %v402 = vsel %vm330, %v397, %v401
    %v404 = vshrl.u32 %v302, 16
    %v406 = vshll.u32 %v302, 16
    %v408 = vrot.slane %v406, 1
    %v409 = vor.u32 %v404, %v408
    %v411 = vshll.u32 %v319, 16
    %v413 = vrot.slane %v411, 1
    %v414 = vsel %vm330, %v409, %v413
    %v416 = vshrl.u32 %v303, 16
    %v418 = vshll.u32 %v303, 16
    %v420 = vrot.slane %v418, 1
    %v421 = vor.u32 %v416, %v420
    %v423 = vshll.u32 %v320, 16
    %v425 = vrot.slane %v423, 1
    %v426 = vsel %vm330, %v421, %v425
    %v428 = vshrl.u32 %v304, 16
    %v430 = vshll.u32 %v304, 16
    %v432 = vrot.slane %v430, 1
    %v433 = vor.u32 %v428, %v432
    %v435 = vshll.u32 %v321, 16
    %v437 = vrot.slane %v435, 1
    %v438 = vsel %vm330, %v433, %v437
    %v440 = vshrl.u32 %v305, 16
    %v442 = vshll.u32 %v305, 16
    %v444 = vrot.slane %v442, 1
    %v445 = vor.u32 %v440, %v444
    %v447 = vshll.u32 %v322, 16
    %v449 = vrot.slane %v447, 1
    %v450 = vsel %vm330, %v445, %v449
    %v452 = vshrl.u32 %v306, 16
    %v454 = vshll.u32 %v306, 16
    %v456 = vrot.slane %v454, 1
    %v457 = vor.u32 %v452, %v456
    %v459 = vshll.u32 %v323, 16
    %v461 = vrot.slane %v459, 1
    %v462 = vsel %vm330, %v457, %v461
    %v464 = vshrl.u32 %v307, 16
    %v466 = vshll.u32 %v307, 16
    %v468 = vrot.slane %v466, 1
    %v469 = vor.u32 %v464, %v468
    %v471 = vshll.u32 %v324, 16
    %v473 = vrot.slane %v471, 1
    %v474 = vsel %vm330, %v469, %v473
    %v476 = vshrl.u32 %v308, 16
    %v478 = vshll.u32 %v308, 16
    %v480 = vrot.slane %v478, 1
    %v481 = vor.u32 %v476, %v480
    %v483 = vshll.u32 %v325, 16
    %v485 = vrot.slane %v483, 1
    %v486 = vsel %vm330, %v481, %v485
    %v488 = vshrl.u32 %v309, 16
    %v490 = vshll.u32 %v309, 16
    %v492 = vrot.slane %v490, 1
    %v493 = vor.u32 %v488, %v492
    %v495 = vshll.u32 %v326, 16
    %v497 = vrot.slane %v495, 1
    %v498 = vsel %vm330, %v493, %v497
    %v500 = vshrl.u32 %v310, 16
    %v502 = vshll.u32 %v310, 16
    %v504 = vrot.slane %v502, 1
    %v505 = vor.u32 %v500, %v504
    %v507 = vshll.u32 %v327, 16
    %v509 = vrot.slane %v507, 1
    %v510 = vsel %vm330, %v505, %v509
    %v512 = vshrl.u32 %v311, 16
    %v514 = vshll.u32 %v311, 16
    %v516 = vrot.slane %v514, 1
    %v517 = vor.u32 %v512, %v516
    %v519 = vshll.u32 %v328, 16
    %v521 = vrot.slane %v519, 1
    %v522 = vsel %vm330, %v517, %v521
    %vm555 = vcmask 1046528
    %v556 = vrot.slane %v296, 1
    %v557 = vrot.slane %v313, 1
    %v558 = vsel %vm555, %v556, %v557
    %v559 = vrot.slane %v297, 1
    %v560 = vrot.slane %v314, 1
    %v561 = vsel %vm555, %v559, %v560
    %v562 = vrot.slane %v298, 1
    %v563 = vrot.slane %v315, 1
    %v564 = vsel %vm555, %v562, %v563
    %v565 = vrot.slane %v299, 1
    %v566 = vrot.slane %v316, 1
    %v567 = vsel %vm555, %v565, %v566
    %v568 = vrot.slane %v300, 1
    %v569 = vrot.slane %v317, 1
    %v570 = vsel %vm555, %v568, %v569
    %v571 = vrot.slane %v301, 1
    %v572 = vrot.slane %v318, 1
    %v573 = vsel %vm555, %v571, %v572
    %v574 = vrot.slane %v302, 1
    %v575 = vrot.slane %v319, 1
    %v576 = vsel %vm555, %v574, %v575
    %v577 = vrot.slane %v303, 1
    %v578 = vrot.slane %v320, 1
    %v579 = vsel %vm555, %v577, %v578
    %v580 = vrot.slane %v304, 1
    %v581 = vrot.slane %v321, 1
    %v582 = vsel %vm555, %v580, %v581
    %v583 = vrot.slane %v305, 1
    %v584 = vrot.slane %v322, 1
    %v585 = vsel %vm555, %v583, %v584
    %v586 = vrot.slane %v306, 1
    %v587 = vrot.slane %v323, 1
    %v588 = vsel %vm555, %v586, %v587
    %v589 = vrot.slane %v307, 1
    %v590 = vrot.slane %v324, 1
    %v591 = vsel %vm555, %v589, %v590
    %v592 = vrot.slane %v308, 1
    %v593 = vrot.slane %v325, 1
    %v594 = vsel %vm555, %v592, %v593
    %v595 = vrot.slane %v309, 1
    %v596 = vrot.slane %v326, 1
    %v597 = vsel %vm555, %v595, %v596
    %v598 = vrot.slane %v310, 1
    %v599 = vrot.slane %v327, 1
    %v600 = vsel %vm555, %v598, %v599
    %v601 = vrot.slane %v311, 1
    %v602 = vrot.slane %v328, 1
    %v603 = vsel %vm555, %v601, %v602
    %v605 = vshrl.u32 %v312, 16
    %v607 = vshll.u32 %v312, 16
    %v609 = vrot.slane %v607, 1
    %v610 = vor.u32 %v605, %v609
    %v612 = vshll.u32 %v329, 16
    %v614 = vrot.slane %v612, 1
    %v615 = vsel %vm330, %v610, %v614
    %v618 = vrot.slane %v312, 1
    %v619 = vrot.slane %v329, 1
    %v620 = vsel %vm555, %v618, %v619
    %621 = vrot.lane.b32.xlu0 %v342, 4
    %v622 = vpop.permute.xlu0 %621
    %623 = vrot.lane.b32.xlu0 %v354, 4
    %v624 = vpop.permute.xlu0 %623
    %625 = vrot.lane.b32.xlu0 %v366, 4
    %v626 = vpop.permute.xlu0 %625
    %627 = vrot.lane.b32.xlu0 %v378, 4
    %v628 = vpop.permute.xlu0 %627
    %629 = vrot.lane.b32.xlu0 %v390, 4
    %v630 = vpop.permute.xlu0 %629
    %631 = vrot.lane.b32.xlu0 %v402, 4
    %v632 = vpop.permute.xlu0 %631
    %633 = vrot.lane.b32.xlu0 %v414, 4
    %v634 = vpop.permute.xlu0 %633
    %635 = vrot.lane.b32.xlu0 %v426, 4
    %v636 = vpop.permute.xlu0 %635
    %637 = vrot.lane.b32.xlu0 %v438, 4
    %v638 = vpop.permute.xlu0 %637
    %639 = vrot.lane.b32.xlu0 %v450, 4
    %v640 = vpop.permute.xlu0 %639
    %641 = vrot.lane.b32.xlu0 %v462, 4
    %v642 = vpop.permute.xlu0 %641
    %643 = vrot.lane.b32.xlu0 %v474, 4
    %v644 = vpop.permute.xlu0 %643
    %645 = vrot.lane.b32.xlu0 %v486, 4
    %v646 = vpop.permute.xlu0 %645
    %647 = vrot.lane.b32.xlu0 %v498, 4
    %v648 = vpop.permute.xlu0 %647
    %649 = vrot.lane.b32.xlu0 %v510, 4
    %v650 = vpop.permute.xlu0 %649
    %651 = vrot.lane.b32.xlu0 %v522, 4
    %v652 = vpop.permute.xlu0 %651
    %653 = vrot.lane.b32.xlu0 %v558, 8
    %v654 = vpop.permute.xlu0 %653
    %655 = vrot.lane.b32.xlu0 %v561, 8
    %v656 = vpop.permute.xlu0 %655
    %657 = vrot.lane.b32.xlu0 %v564, 8
    %v658 = vpop.permute.xlu0 %657
    %659 = vrot.lane.b32.xlu0 %v567, 8
    %v660 = vpop.permute.xlu0 %659
    %661 = vrot.lane.b32.xlu0 %v570, 8
    %v662 = vpop.permute.xlu0 %661
    %663 = vrot.lane.b32.xlu0 %v573, 8
    %v664 = vpop.permute.xlu0 %663
    %665 = vrot.lane.b32.xlu0 %v576, 8
    %v666 = vpop.permute.xlu0 %665
    %667 = vrot.lane.b32.xlu0 %v579, 8
    %v668 = vpop.permute.xlu0 %667
    %669 = vrot.lane.b32.xlu0 %v582, 8
    %v670 = vpop.permute.xlu0 %669
    %671 = vrot.lane.b32.xlu0 %v585, 8
    %v672 = vpop.permute.xlu0 %671
    %673 = vrot.lane.b32.xlu0 %v588, 8
    %v674 = vpop.permute.xlu0 %673
    %675 = vrot.lane.b32.xlu0 %v591, 8
    %v676 = vpop.permute.xlu0 %675
    %677 = vrot.lane.b32.xlu0 %v594, 8
    %v678 = vpop.permute.xlu0 %677
    %679 = vrot.lane.b32.xlu0 %v597, 8
    %v680 = vpop.permute.xlu0 %679
    %681 = vrot.lane.b32.xlu0 %v600, 8
    %v682 = vpop.permute.xlu0 %681
    %683 = vrot.lane.b32.xlu0 %v603, 8
    %v684 = vpop.permute.xlu0 %683
    %685 = vrot.lane.b32.xlu0 %v297, 12
    %v686 = vpop.permute.xlu0 %685
    %687 = vrot.lane.b32.xlu0 %v298, 12
    %v688 = vpop.permute.xlu0 %687
    %689 = vrot.lane.b32.xlu0 %v299, 12
    %v690 = vpop.permute.xlu0 %689
    %691 = vrot.lane.b32.xlu0 %v300, 12
    %v692 = vpop.permute.xlu0 %691
    %693 = vrot.lane.b32.xlu0 %v301, 12
    %v694 = vpop.permute.xlu0 %693
    %695 = vrot.lane.b32.xlu0 %v302, 12
    %v696 = vpop.permute.xlu0 %695
    %697 = vrot.lane.b32.xlu0 %v303, 12
    %v698 = vpop.permute.xlu0 %697
    %699 = vrot.lane.b32.xlu0 %v304, 12
    %v700 = vpop.permute.xlu0 %699
    %701 = vrot.lane.b32.xlu0 %v305, 12
    %v702 = vpop.permute.xlu0 %701
    %703 = vrot.lane.b32.xlu0 %v306, 12
    %v704 = vpop.permute.xlu0 %703
    %705 = vrot.lane.b32.xlu0 %v307, 12
    %v706 = vpop.permute.xlu0 %705
    %707 = vrot.lane.b32.xlu0 %v308, 12
    %v708 = vpop.permute.xlu0 %707
    %709 = vrot.lane.b32.xlu0 %v309, 12
    %v710 = vpop.permute.xlu0 %709
    %711 = vrot.lane.b32.xlu0 %v310, 12
    %v712 = vpop.permute.xlu0 %711
    %713 = vrot.lane.b32.xlu0 %v311, 12
    %v714 = vpop.permute.xlu0 %713
    %715 = vrot.lane.b32.xlu0 %v312, 12
    %v716 = vpop.permute.xlu0 %715
    %717 = vrot.lane.b32.xlu0 %v354, 16
    %v718 = vpop.permute.xlu0 %717
    %719 = vrot.lane.b32.xlu0 %v366, 16
    %v720 = vpop.permute.xlu0 %719
    %721 = vrot.lane.b32.xlu0 %v378, 16
    %v722 = vpop.permute.xlu0 %721
    %723 = vrot.lane.b32.xlu0 %v390, 16
    %v724 = vpop.permute.xlu0 %723
    %725 = vrot.lane.b32.xlu0 %v402, 16
    %v726 = vpop.permute.xlu0 %725
    %727 = vrot.lane.b32.xlu0 %v414, 16
    %v728 = vpop.permute.xlu0 %727
    %729 = vrot.lane.b32.xlu0 %v426, 16
    %v730 = vpop.permute.xlu0 %729
    %731 = vrot.lane.b32.xlu0 %v438, 16
    %v732 = vpop.permute.xlu0 %731
    %733 = vrot.lane.b32.xlu0 %v450, 16
    %v734 = vpop.permute.xlu0 %733
    %735 = vrot.lane.b32.xlu0 %v462, 16
    %v736 = vpop.permute.xlu0 %735
    %737 = vrot.lane.b32.xlu0 %v474, 16
    %v738 = vpop.permute.xlu0 %737
    %739 = vrot.lane.b32.xlu0 %v486, 16
    %v740 = vpop.permute.xlu0 %739
    %741 = vrot.lane.b32.xlu0 %v498, 16
    %v742 = vpop.permute.xlu0 %741
    %743 = vrot.lane.b32.xlu0 %v510, 16
    %v744 = vpop.permute.xlu0 %743
    %745 = vrot.lane.b32.xlu0 %v522, 16
    %v746 = vpop.permute.xlu0 %745
    %747 = vrot.lane.b32.xlu0 %v615, 16
    %v748 = vpop.permute.xlu0 %747
    %749 = vrot.lane.b32.xlu0 %v561, 20
    %v750 = vpop.permute.xlu0 %749
    %751 = vrot.lane.b32.xlu0 %v564, 20
    %v752 = vpop.permute.xlu0 %751
    %753 = vrot.lane.b32.xlu0 %v567, 20
    %v754 = vpop.permute.xlu0 %753
    %755 = vrot.lane.b32.xlu0 %v570, 20
    %v756 = vpop.permute.xlu0 %755
    %757 = vrot.lane.b32.xlu0 %v573, 20
    %v758 = vpop.permute.xlu0 %757
    %759 = vrot.lane.b32.xlu0 %v576, 20
    %v760 = vpop.permute.xlu0 %759
    %761 = vrot.lane.b32.xlu0 %v579, 20
    %v762 = vpop.permute.xlu0 %761
    %763 = vrot.lane.b32.xlu0 %v582, 20
    %v764 = vpop.permute.xlu0 %763
    %765 = vrot.lane.b32.xlu0 %v585, 20
    %v766 = vpop.permute.xlu0 %765
    %767 = vrot.lane.b32.xlu0 %v588, 20
    %v768 = vpop.permute.xlu0 %767
    %769 = vrot.lane.b32.xlu0 %v591, 20
    %v770 = vpop.permute.xlu0 %769
    %771 = vrot.lane.b32.xlu0 %v594, 20
    %v772 = vpop.permute.xlu0 %771
    %773 = vrot.lane.b32.xlu0 %v597, 20
    %v774 = vpop.permute.xlu0 %773
    %775 = vrot.lane.b32.xlu0 %v600, 20
    %v776 = vpop.permute.xlu0 %775
    %777 = vrot.lane.b32.xlu0 %v603, 20
    %v778 = vpop.permute.xlu0 %777
    %779 = vrot.lane.b32.xlu0 %v620, 20
    %v780 = vpop.permute.xlu0 %779
    %781 = vrot.lane.b32.xlu0 %v298, 24
    %v782 = vpop.permute.xlu0 %781
    %783 = vrot.lane.b32.xlu0 %v299, 24
    %v784 = vpop.permute.xlu0 %783
    %785 = vrot.lane.b32.xlu0 %v300, 24
    %v786 = vpop.permute.xlu0 %785
    %787 = vrot.lane.b32.xlu0 %v301, 24
    %v788 = vpop.permute.xlu0 %787
    %789 = vrot.lane.b32.xlu0 %v302, 24
    %v790 = vpop.permute.xlu0 %789
    %791 = vrot.lane.b32.xlu0 %v303, 24
    %v792 = vpop.permute.xlu0 %791
    %793 = vrot.lane.b32.xlu0 %v304, 24
    %v794 = vpop.permute.xlu0 %793
    %795 = vrot.lane.b32.xlu0 %v305, 24
    %v796 = vpop.permute.xlu0 %795
    %797 = vrot.lane.b32.xlu0 %v306, 24
    %v798 = vpop.permute.xlu0 %797
    %799 = vrot.lane.b32.xlu0 %v307, 24
    %v800 = vpop.permute.xlu0 %799
    %801 = vrot.lane.b32.xlu0 %v308, 24
    %v802 = vpop.permute.xlu0 %801
    %803 = vrot.lane.b32.xlu0 %v309, 24
    %v804 = vpop.permute.xlu0 %803
    %805 = vrot.lane.b32.xlu0 %v310, 24
    %v806 = vpop.permute.xlu0 %805
    %807 = vrot.lane.b32.xlu0 %v311, 24
    %v808 = vpop.permute.xlu0 %807
    %809 = vrot.lane.b32.xlu0 %v312, 24
    %v810 = vpop.permute.xlu0 %809
    %811 = vrot.lane.b32.xlu0 %v296, 24
    %v812 = vpop.permute.xlu0 %811
    %813 = vrot.lane.b32.xlu0 %v366, 28
    %v814 = vpop.permute.xlu0 %813
    %815 = vrot.lane.b32.xlu0 %v378, 28
    %v816 = vpop.permute.xlu0 %815
    %817 = vrot.lane.b32.xlu0 %v390, 28
    %v818 = vpop.permute.xlu0 %817
    %819 = vrot.lane.b32.xlu0 %v402, 28
    %v820 = vpop.permute.xlu0 %819
    %821 = vrot.lane.b32.xlu0 %v414, 28
    %v822 = vpop.permute.xlu0 %821
    %823 = vrot.lane.b32.xlu0 %v426, 28
    %v824 = vpop.permute.xlu0 %823
    %825 = vrot.lane.b32.xlu0 %v438, 28
    %v826 = vpop.permute.xlu0 %825
    %827 = vrot.lane.b32.xlu0 %v450, 28
    %v828 = vpop.permute.xlu0 %827
    %829 = vrot.lane.b32.xlu0 %v462, 28
    %v830 = vpop.permute.xlu0 %829
    %831 = vrot.lane.b32.xlu0 %v474, 28
    %v832 = vpop.permute.xlu0 %831
    %833 = vrot.lane.b32.xlu0 %v486, 28
    %v834 = vpop.permute.xlu0 %833
    %835 = vrot.lane.b32.xlu0 %v498, 28
    %v836 = vpop.permute.xlu0 %835
    %837 = vrot.lane.b32.xlu0 %v510, 28
    %v838 = vpop.permute.xlu0 %837
    %839 = vrot.lane.b32.xlu0 %v522, 28
    %v840 = vpop.permute.xlu0 %839
    %841 = vrot.lane.b32.xlu0 %v615, 28
    %v842 = vpop.permute.xlu0 %841
    %843 = vrot.lane.b32.xlu0 %v342, 28
    %v844 = vpop.permute.xlu0 %843
    %845 = vrot.lane.b32.xlu0 %v564, 32
    %v846 = vpop.permute.xlu0 %845
    %847 = vrot.lane.b32.xlu0 %v567, 32
    %v848 = vpop.permute.xlu0 %847
    %849 = vrot.lane.b32.xlu0 %v570, 32
    %v850 = vpop.permute.xlu0 %849
    %851 = vrot.lane.b32.xlu0 %v573, 32
    %v852 = vpop.permute.xlu0 %851
    %853 = vrot.lane.b32.xlu0 %v576, 32
    %v854 = vpop.permute.xlu0 %853
    %855 = vrot.lane.b32.xlu0 %v579, 32
    %v856 = vpop.permute.xlu0 %855
    %857 = vrot.lane.b32.xlu0 %v582, 32
    %v858 = vpop.permute.xlu0 %857
    %859 = vrot.lane.b32.xlu0 %v585, 32
    %v860 = vpop.permute.xlu0 %859
    %861 = vrot.lane.b32.xlu0 %v588, 32
    %v862 = vpop.permute.xlu0 %861
    %863 = vrot.lane.b32.xlu0 %v591, 32
    %v864 = vpop.permute.xlu0 %863
    %865 = vrot.lane.b32.xlu0 %v594, 32
    %v866 = vpop.permute.xlu0 %865
    %867 = vrot.lane.b32.xlu0 %v597, 32
    %v868 = vpop.permute.xlu0 %867
    %869 = vrot.lane.b32.xlu0 %v600, 32
    %v870 = vpop.permute.xlu0 %869
    %871 = vrot.lane.b32.xlu0 %v603, 32
    %v872 = vpop.permute.xlu0 %871
    %873 = vrot.lane.b32.xlu0 %v620, 32
    %v874 = vpop.permute.xlu0 %873
    %875 = vrot.lane.b32.xlu0 %v558, 32
    %v876 = vpop.permute.xlu0 %875
    %vm877 = vcmask 31744
    %v879 = vsel %vm877, %v296, %v622
    %v881 = vsel %vm877, %v297, %v624
    %v883 = vsel %vm877, %v298, %v626
    %v885 = vsel %vm877, %v299, %v628
    %v887 = vsel %vm877, %v300, %v630
    %v889 = vsel %vm877, %v301, %v632
    %v891 = vsel %vm877, %v302, %v634
    %v893 = vsel %vm877, %v303, %v636
    %v895 = vsel %vm877, %v304, %v638
    %v897 = vsel %vm877, %v305, %v640
    %v899 = vsel %vm877, %v306, %v642
    %v901 = vsel %vm877, %v307, %v644
    %v903 = vsel %vm877, %v308, %v646
    %v905 = vsel %vm877, %v309, %v648
    %v907 = vsel %vm877, %v310, %v650
    %v909 = vsel %vm877, %v311, %v652
    %vm910 = vcmask 64512
    %v912 = vsel %vm910, %v879, %v654
    %v914 = vsel %vm910, %v881, %v656
    %v916 = vsel %vm910, %v883, %v658
    %v918 = vsel %vm910, %v885, %v660
    %v920 = vsel %vm910, %v887, %v662
    %v922 = vsel %vm910, %v889, %v664
    %v924 = vsel %vm910, %v891, %v666
    %v926 = vsel %vm910, %v893, %v668
    %v928 = vsel %vm910, %v895, %v670
    %v930 = vsel %vm910, %v897, %v672
    %v932 = vsel %vm910, %v899, %v674
    %v934 = vsel %vm910, %v901, %v676
    %v936 = vsel %vm910, %v903, %v678
    %v938 = vsel %vm910, %v905, %v680
    %v940 = vsel %vm910, %v907, %v682
    %v942 = vsel %vm910, %v909, %v684
    %vm943 = vcmask 97280
    %v945 = vsel %vm943, %v912, %v686
    %v947 = vsel %vm943, %v914, %v688
    %v949 = vsel %vm943, %v916, %v690
    %v951 = vsel %vm943, %v918, %v692
    %v953 = vsel %vm943, %v920, %v694
    %v955 = vsel %vm943, %v922, %v696
    %v957 = vsel %vm943, %v924, %v698
    %v959 = vsel %vm943, %v926, %v700
    %v961 = vsel %vm943, %v928, %v702
    %v963 = vsel %vm943, %v930, %v704
    %v965 = vsel %vm943, %v932, %v706
    %v967 = vsel %vm943, %v934, %v708
    %v969 = vsel %vm943, %v936, %v710
    %v971 = vsel %vm943, %v938, %v712
    %v973 = vsel %vm943, %v940, %v714
    %v975 = vsel %vm943, %v942, %v716
    %vm976 = vcmask 130048
    %v978 = vsel %vm976, %v945, %v718
    %v980 = vsel %vm976, %v947, %v720
    %v982 = vsel %vm976, %v949, %v722
    %v984 = vsel %vm976, %v951, %v724
    %v986 = vsel %vm976, %v953, %v726
    %v988 = vsel %vm976, %v955, %v728
    %v990 = vsel %vm976, %v957, %v730
    %v992 = vsel %vm976, %v959, %v732
    %v994 = vsel %vm976, %v961, %v734
    %v996 = vsel %vm976, %v963, %v736
    %v998 = vsel %vm976, %v965, %v738
    %v1000 = vsel %vm976, %v967, %v740
    %v1002 = vsel %vm976, %v969, %v742
    %v1004 = vsel %vm976, %v971, %v744
    %v1006 = vsel %vm976, %v973, %v746
    %v1008 = vsel %vm976, %v975, %v748
    %vm1009 = vcmask 162816
    %v1011 = vsel %vm1009, %v978, %v750
    %v1013 = vsel %vm1009, %v980, %v752
    %v1015 = vsel %vm1009, %v982, %v754
    %v1017 = vsel %vm1009, %v984, %v756
    %v1019 = vsel %vm1009, %v986, %v758
    %v1021 = vsel %vm1009, %v988, %v760
    %v1023 = vsel %vm1009, %v990, %v762
    %v1025 = vsel %vm1009, %v992, %v764
    %v1027 = vsel %vm1009, %v994, %v766
    %v1029 = vsel %vm1009, %v996, %v768
    %v1031 = vsel %vm1009, %v998, %v770
    %v1033 = vsel %vm1009, %v1000, %v772
    %v1035 = vsel %vm1009, %v1002, %v774
    %v1037 = vsel %vm1009, %v1004, %v776
    %v1039 = vsel %vm1009, %v1006, %v778
    %v1041 = vsel %vm1009, %v1008, %v780
    %vm1042 = vcmask 195584
    %v1044 = vsel %vm1042, %v1011, %v782
    %v1046 = vsel %vm1042, %v1013, %v784
    %v1048 = vsel %vm1042, %v1015, %v786
    %v1050 = vsel %vm1042, %v1017, %v788
    %v1052 = vsel %vm1042, %v1019, %v790
    %v1054 = vsel %vm1042, %v1021, %v792
    %v1056 = vsel %vm1042, %v1023, %v794
    %v1058 = vsel %vm1042, %v1025, %v796
    %v1060 = vsel %vm1042, %v1027, %v798
    %v1062 = vsel %vm1042, %v1029, %v800
    %v1064 = vsel %vm1042, %v1031, %v802
    %v1066 = vsel %vm1042, %v1033, %v804
    %v1068 = vsel %vm1042, %v1035, %v806
    %v1070 = vsel %vm1042, %v1037, %v808
    %v1072 = vsel %vm1042, %v1039, %v810
    %v1074 = vsel %vm1042, %v1041, %v812
    %vm1075 = vcmask 228352
    %v1077 = vsel %vm1075, %v1044, %v814
    %v1079 = vsel %vm1075, %v1046, %v816
    %v1081 = vsel %vm1075, %v1048, %v818
    %v1083 = vsel %vm1075, %v1050, %v820
    %v1085 = vsel %vm1075, %v1052, %v822
    %v1087 = vsel %vm1075, %v1054, %v824
    %v1089 = vsel %vm1075, %v1056, %v826
    %v1091 = vsel %vm1075, %v1058, %v828
    %v1093 = vsel %vm1075, %v1060, %v830
    %v1095 = vsel %vm1075, %v1062, %v832
    %v1097 = vsel %vm1075, %v1064, %v834
    %v1099 = vsel %vm1075, %v1066, %v836
    %v1101 = vsel %vm1075, %v1068, %v838
    %v1103 = vsel %vm1075, %v1070, %v840
    %v1105 = vsel %vm1075, %v1072, %v842
    %v1107 = vsel %vm1075, %v1074, %v844
    %vm1108 = vcmask 261120
    %v1110 = vsel %vm1108, %v1077, %v846
    %v1112 = vsel %vm1108, %v1079, %v848
    %v1114 = vsel %vm1108, %v1081, %v850
    %v1116 = vsel %vm1108, %v1083, %v852
    %v1118 = vsel %vm1108, %v1085, %v854
    %v1120 = vsel %vm1108, %v1087, %v856
    %v1122 = vsel %vm1108, %v1089, %v858
    %v1124 = vsel %vm1108, %v1091, %v860
    %v1126 = vsel %vm1108, %v1093, %v862
    %v1128 = vsel %vm1108, %v1095, %v864
    %v1130 = vsel %vm1108, %v1097, %v866
    %v1132 = vsel %vm1108, %v1099, %v868
    %v1134 = vsel %vm1108, %v1101, %v870
    %v1136 = vsel %vm1108, %v1103, %v872
    %v1138 = vsel %vm1108, %v1105, %v874
    %v1140 = vsel %vm1108, %v1107, %v876
    %v1142 = vlaneseq
    %v1143 = vshrl.u32 %v1142, 7
    %v1144 = vsub.s32 0, %v1143
    %v1145 = vrot.slane %v27, %v1144
    %v1152 = vunpack.c.l.b16 %v22
    %v1153 = vunpack.c.l.b16 %v23
    %v1154 = vunpack.c.l.b16 %v24
    %v1155 = vunpack.c.l.b16 %v25
    %v1156 = vunpack.c.l.b16 %v26
    %v1157 = vpack.c.b16 %v1153, %v1152
    %v1158 = vpack.c.b16 %v1155, %v1154
    %v1159 = vpack.c.b16 %v1156, %v1156
    %vm1162 = vcmask 293888
    %v1163 = vsel %vm1162, %v1110, 0
    %v1165 = vsel %vm1162, %v1112, 0
    %v1167 = vsel %vm1162, %v1114, 0
    %v1169 = vsel %vm1162, %v1116, 0
    %v1171 = vsel %vm1162, %v1118, 0
    %v1173 = vsel %vm1162, %v1120, 0
    %v1175 = vsel %vm1162, %v1122, 0
    %v1177 = vsel %vm1162, %v1124, 0
    %v1179 = vsel %vm1162, %v1126, 0
    %v1181 = vsel %vm1162, %v1128, 0
    %v1183 = vsel %vm1162, %v1130, 0
    %v1185 = vsel %vm1162, %v1132, 0
    %v1187 = vsel %vm1162, %v1134, 0
    %v1189 = vsel %vm1162, %v1136, 0
    %v1191 = vsel %vm1162, %v1138, 0
    %v1193 = vsel %vm1162, %v1140, 0
    %vm1195 = vcmask 1041408
    %v1197 = vsel %vm1195, %v1159, 0
    %1199 = vmatprep.subr.bf16.mxu0 0
    %1200 = vmatpush1.bf16.msra.mxu0 %v1157
    %1201 = vmatprep.subr.bf16.mxu0 0
    %1202 = vmatpush1.bf16.msra.mxu0 %v1158
    %1203 = vmatprep.subr.bf16.mxu0 0
    %1204 = vmatpush1.bf16.msra.mxu0 %v1197
    %1205 = vmatprep.subr.bf16.mxu0 0
    %1206 = vmatpush1.bf16.msra.mxu0 0
    %1207 = vmatprep.subr.bf16.mxu0 0
    %1208 = vmatpush1.bf16.msra.mxu0 0
    %1209 = vmatprep.subr.bf16.mxu0 0
    %1210 = vmatpush1.bf16.msra.mxu0 0
    %1211 = vmatprep.subr.bf16.mxu0 0
    %1212 = vmatpush1.bf16.msra.mxu0 0
    %1213 = vmatprep.subr.bf16.mxu0 0
    %1214 = vmatpush1.bf16.msra.mxu0 0
    %1215 = vmatprep.subr.bf16.mxu0 0
    %1216 = vmatpush1.bf16.msra.mxu0 0
    %1217 = vmatprep.subr.bf16.mxu0 0
    %1218 = vmatpush1.bf16.msra.mxu0 0
    %1219 = vmatprep.subr.bf16.mxu0 0
    %1220 = vmatpush1.bf16.msra.mxu0 0
    %1221 = vmatprep.subr.bf16.mxu0 0
    %1222 = vmatpush1.bf16.msra.mxu0 0
    %1223 = vmatprep.subr.bf16.mxu0 0
    %1224 = vmatpush1.bf16.msra.mxu0 0
    %1225 = vmatprep.subr.bf16.mxu0 0
    %1226 = vmatpush1.bf16.msra.mxu0 0
    %1227 = vmatprep.subr.bf16.mxu0 0
    %1228 = vmatpush1.bf16.msra.mxu0 0
    %1229 = vmatprep.subr.bf16.mxu0 0
    %1230 = vmatpush1.bf16.msra.mxu0 0
    %1231 = vmatprep.mubr.bf16.mxu0 0
    %1232 = vmatmul.mubr.bf16.gmra.mrb[0].mxu0 %v1163
    %v1233 = vpop.f32.mrb[0].mxu0
    %v1234 = vadd.f32 %v1145, %v1233
    %v1235 = vpop.f32.mrb[0].mxu0
    %v1236 = vpop.f32.mrb[0].mxu0
    %v1237 = vadd.f32 %v1145, %v1236
    %v1238 = vpop.f32.mrb[0].mxu0
    %1239 = vmatprep.mubr.bf16.mxu0 0
    %1240 = vmatmul.mubr.bf16.gmra.mrb[0].mxu0 %v1165
    %v1241 = vpop.f32.mrb[0].mxu0
    %v1242 = vadd.f32 %v1145, %v1241
    %v1243 = vpop.f32.mrb[0].mxu0
    %v1244 = vpop.f32.mrb[0].mxu0
    %v1245 = vadd.f32 %v1145, %v1244
    %v1246 = vpop.f32.mrb[0].mxu0
    %1247 = vmatprep.mubr.bf16.mxu0 0
    %1248 = vmatmul.mubr.bf16.gmra.mrb[0].mxu0 %v1167
    %v1249 = vpop.f32.mrb[0].mxu0
    %v1250 = vadd.f32 %v1145, %v1249
    %v1251 = vpop.f32.mrb[0].mxu0
    %v1252 = vpop.f32.mrb[0].mxu0
    %v1253 = vadd.f32 %v1145, %v1252
    %v1254 = vpop.f32.mrb[0].mxu0
    %1255 = vmatprep.mubr.bf16.mxu0 0
    %1256 = vmatmul.mubr.bf16.gmra.mrb[0].mxu0 %v1169
    %v1257 = vpop.f32.mrb[0].mxu0
    %v1258 = vadd.f32 %v1145, %v1257
    %v1259 = vpop.f32.mrb[0].mxu0
    %v1260 = vpop.f32.mrb[0].mxu0
    %v1261 = vadd.f32 %v1145, %v1260
    %v1262 = vpop.f32.mrb[0].mxu0
    %1263 = vmatprep.mubr.bf16.mxu0 0
    %1264 = vmatmul.mubr.bf16.gmra.mrb[0].mxu0 %v1171
    %v1265 = vpop.f32.mrb[0].mxu0
    %v1266 = vadd.f32 %v1145, %v1265
    %v1267 = vpop.f32.mrb[0].mxu0
    %v1268 = vpop.f32.mrb[0].mxu0
    %v1269 = vadd.f32 %v1145, %v1268
    %v1270 = vpop.f32.mrb[0].mxu0
    %1271 = vmatprep.mubr.bf16.mxu0 0
    %1272 = vmatmul.mubr.bf16.gmra.mrb[0].mxu0 %v1173
    %v1273 = vpop.f32.mrb[0].mxu0
    %v1274 = vadd.f32 %v1145, %v1273
    %v1275 = vpop.f32.mrb[0].mxu0
    %v1276 = vpop.f32.mrb[0].mxu0
    %v1277 = vadd.f32 %v1145, %v1276
    %v1278 = vpop.f32.mrb[0].mxu0
    %1279 = vmatprep.mubr.bf16.mxu0 0
    %1280 = vmatmul.mubr.bf16.gmra.mrb[0].mxu0 %v1175
    %v1281 = vpop.f32.mrb[0].mxu0
    %v1282 = vadd.f32 %v1145, %v1281
    %v1283 = vpop.f32.mrb[0].mxu0
    %v1284 = vpop.f32.mrb[0].mxu0
    %v1285 = vadd.f32 %v1145, %v1284
    %v1286 = vpop.f32.mrb[0].mxu0
    %1287 = vmatprep.mubr.bf16.mxu0 0
    %1288 = vmatmul.mubr.bf16.gmra.mrb[0].mxu0 %v1177
    %v1289 = vpop.f32.mrb[0].mxu0
    %v1290 = vadd.f32 %v1145, %v1289
    %v1291 = vpop.f32.mrb[0].mxu0
    %v1292 = vpop.f32.mrb[0].mxu0
    %v1293 = vadd.f32 %v1145, %v1292
    %v1294 = vpop.f32.mrb[0].mxu0
    %1295 = vmatprep.mubr.bf16.mxu0 0
    %1296 = vmatmul.mubr.bf16.gmra.mrb[0].mxu0 %v1179
    %v1297 = vpop.f32.mrb[0].mxu0
    %v1298 = vadd.f32 %v1145, %v1297
    %v1299 = vpop.f32.mrb[0].mxu0
    %v1300 = vpop.f32.mrb[0].mxu0
    %v1301 = vadd.f32 %v1145, %v1300
    %v1302 = vpop.f32.mrb[0].mxu0
    %1303 = vmatprep.mubr.bf16.mxu0 0
    %1304 = vmatmul.mubr.bf16.gmra.mrb[0].mxu0 %v1181
    %v1305 = vpop.f32.mrb[0].mxu0
    %v1306 = vadd.f32 %v1145, %v1305
    %v1307 = vpop.f32.mrb[0].mxu0
    %v1308 = vpop.f32.mrb[0].mxu0
    %v1309 = vadd.f32 %v1145, %v1308
    %v1310 = vpop.f32.mrb[0].mxu0
    %1311 = vmatprep.mubr.bf16.mxu0 0
    %1312 = vmatmul.mubr.bf16.gmra.mrb[0].mxu0 %v1183
    %v1313 = vpop.f32.mrb[0].mxu0
    %v1314 = vadd.f32 %v1145, %v1313
    %v1315 = vpop.f32.mrb[0].mxu0
    %v1316 = vpop.f32.mrb[0].mxu0
    %v1317 = vadd.f32 %v1145, %v1316
    %v1318 = vpop.f32.mrb[0].mxu0
    %1319 = vmatprep.mubr.bf16.mxu0 0
    %1320 = vmatmul.mubr.bf16.gmra.mrb[0].mxu0 %v1185
    %v1321 = vpop.f32.mrb[0].mxu0
    %v1322 = vadd.f32 %v1145, %v1321
    %v1323 = vpop.f32.mrb[0].mxu0
    %v1324 = vpop.f32.mrb[0].mxu0
    %v1325 = vadd.f32 %v1145, %v1324
    %v1326 = vpop.f32.mrb[0].mxu0
    %1327 = vmatprep.mubr.bf16.mxu0 0
    %1328 = vmatmul.mubr.bf16.gmra.mrb[0].mxu0 %v1187
    %v1329 = vpop.f32.mrb[0].mxu0
    %v1330 = vadd.f32 %v1145, %v1329
    %v1331 = vpop.f32.mrb[0].mxu0
    %v1332 = vpop.f32.mrb[0].mxu0
    %v1333 = vadd.f32 %v1145, %v1332
    %v1334 = vpop.f32.mrb[0].mxu0
    %1335 = vmatprep.mubr.bf16.mxu0 0
    %1336 = vmatmul.mubr.bf16.gmra.mrb[0].mxu0 %v1189
    %v1337 = vpop.f32.mrb[0].mxu0
    %v1338 = vadd.f32 %v1145, %v1337
    %v1339 = vpop.f32.mrb[0].mxu0
    %v1340 = vpop.f32.mrb[0].mxu0
    %v1341 = vadd.f32 %v1145, %v1340
    %v1342 = vpop.f32.mrb[0].mxu0
    %1343 = vmatprep.mubr.bf16.mxu0 0
    %1344 = vmatmul.mubr.bf16.gmra.mrb[0].mxu0 %v1191
    %v1345 = vpop.f32.mrb[0].mxu0
    %v1346 = vadd.f32 %v1145, %v1345
    %v1347 = vpop.f32.mrb[0].mxu0
    %v1348 = vpop.f32.mrb[0].mxu0
    %v1349 = vadd.f32 %v1145, %v1348
    %v1350 = vpop.f32.mrb[0].mxu0
    %1351 = vmatprep.mubr.bf16.mxu0 0
    %1352 = vmatmul.mubr.bf16.gmra.mrb[0].mxu0 %v1193
    %v1353 = vpop.f32.mrb[0].mxu0
    %v1354 = vadd.f32 %v1145, %v1353
    %v1355 = vpop.f32.mrb[0].mxu0
    %v1356 = vpop.f32.mrb[0].mxu0
    %v1357 = vadd.f32 %v1145, %v1356
    %v1358 = vpop.f32.mrb[0].mxu0
    %1359 = vdwg.mxu0
    %v1360 = vmax.f32 %v1234, 0.0
    %v1361 = vmax.f32 %v1237, 0.0
    %v1362 = vmax.f32 %v1242, 0.0
    %v1363 = vmax.f32 %v1245, 0.0
    %v1364 = vmax.f32 %v1250, 0.0
    %v1365 = vmax.f32 %v1253, 0.0
    %v1366 = vmax.f32 %v1258, 0.0
    %v1367 = vmax.f32 %v1261, 0.0
    %v1368 = vmax.f32 %v1266, 0.0
    %v1369 = vmax.f32 %v1269, 0.0
    %v1370 = vmax.f32 %v1274, 0.0
    %v1371 = vmax.f32 %v1277, 0.0
    %v1372 = vmax.f32 %v1282, 0.0
    %v1373 = vmax.f32 %v1285, 0.0
    %v1374 = vmax.f32 %v1290, 0.0
    %v1375 = vmax.f32 %v1293, 0.0
    %v1376 = vmax.f32 %v1298, 0.0
    %v1377 = vmax.f32 %v1301, 0.0
    %v1378 = vmax.f32 %v1306, 0.0
    %v1379 = vmax.f32 %v1309, 0.0
    %v1380 = vmax.f32 %v1314, 0.0
    %v1381 = vmax.f32 %v1317, 0.0
    %v1382 = vmax.f32 %v1322, 0.0
    %v1383 = vmax.f32 %v1325, 0.0
    %v1384 = vmax.f32 %v1330, 0.0
    %v1385 = vmax.f32 %v1333, 0.0
    %v1386 = vmax.f32 %v1338, 0.0
    %v1387 = vmax.f32 %v1341, 0.0
    %v1388 = vmax.f32 %v1346, 0.0
    %v1389 = vmax.f32 %v1349, 0.0
    %v1390 = vmax.f32 %v1354, 0.0
    %v1391 = vmax.f32 %v1357, 0.0
    %v1392 = vsel %vm910, %v1360, 0.0
    %v1393 = vsel %vm910, %v1361, 0.0
    %v1394 = vadd.f32 %v1392, %v1393
    %v1395 = vsel %vm910, %v1362, 0.0
    %v1396 = vadd.f32 %v1394, %v1395
    %v1397 = vsel %vm910, %v1363, 0.0
    %v1398 = vadd.f32 %v1396, %v1397
    %v1399 = vsel %vm910, %v1364, 0.0
    %v1400 = vadd.f32 %v1398, %v1399
    %v1401 = vsel %vm910, %v1365, 0.0
    %v1402 = vadd.f32 %v1400, %v1401
    %v1403 = vsel %vm910, %v1366, 0.0
    %v1404 = vadd.f32 %v1402, %v1403
    %v1405 = vsel %vm910, %v1367, 0.0
    %v1406 = vadd.f32 %v1404, %v1405
    %v1407 = vsel %vm910, %v1368, 0.0
    %v1408 = vadd.f32 %v1406, %v1407
    %v1409 = vsel %vm910, %v1369, 0.0
    %v1410 = vadd.f32 %v1408, %v1409
    %v1411 = vsel %vm910, %v1370, 0.0
    %v1412 = vadd.f32 %v1410, %v1411
    %v1413 = vsel %vm910, %v1371, 0.0
    %v1414 = vadd.f32 %v1412, %v1413
    %v1415 = vsel %vm910, %v1372, 0.0
    %v1416 = vadd.f32 %v1414, %v1415
    %v1417 = vsel %vm910, %v1373, 0.0
    %v1418 = vadd.f32 %v1416, %v1417
    %v1419 = vsel %vm910, %v1374, 0.0
    %v1420 = vadd.f32 %v1418, %v1419
    %v1421 = vsel %vm910, %v1375, 0.0
    %v1422 = vadd.f32 %v1420, %v1421
    %v1423 = vsel %vm910, %v1376, 0.0
    %v1424 = vadd.f32 %v1422, %v1423
    %v1425 = vsel %vm910, %v1377, 0.0
    %v1426 = vadd.f32 %v1424, %v1425
    %v1427 = vsel %vm910, %v1378, 0.0
    %v1428 = vadd.f32 %v1426, %v1427
    %v1429 = vsel %vm910, %v1379, 0.0
    %v1430 = vadd.f32 %v1428, %v1429
    %v1431 = vsel %vm910, %v1380, 0.0
    %v1432 = vadd.f32 %v1430, %v1431
    %v1433 = vsel %vm910, %v1381, 0.0
    %v1434 = vadd.f32 %v1432, %v1433
    %v1435 = vsel %vm910, %v1382, 0.0
    %v1436 = vadd.f32 %v1434, %v1435
    %v1437 = vsel %vm910, %v1383, 0.0
    %v1438 = vadd.f32 %v1436, %v1437
    %v1439 = vsel %vm910, %v1384, 0.0
    %v1440 = vadd.f32 %v1438, %v1439
    %v1441 = vsel %vm910, %v1385, 0.0
    %v1442 = vadd.f32 %v1440, %v1441
    %v1443 = vsel %vm910, %v1386, 0.0
    %v1444 = vadd.f32 %v1442, %v1443
    %v1445 = vsel %vm910, %v1387, 0.0
    %v1446 = vadd.f32 %v1444, %v1445
    %v1447 = vsel %vm910, %v1388, 0.0
    %v1448 = vadd.f32 %v1446, %v1447
    %v1449 = vsel %vm910, %v1389, 0.0
    %v1450 = vadd.f32 %v1448, %v1449
    %v1451 = vsel %vm910, %v1390, 0.0
    %v1452 = vadd.f32 %v1450, %v1451
    %v1453 = vsel %vm910, %v1391, 0.0
    %v1454 = vadd.f32 %v1452, %v1453
    %v1455 = vrot.slane %v1454, 4
    %v1456 = vadd.f32 %v1454, %v1455
    %v1457 = vrot.slane %v1456, 2
    %v1458 = vadd.f32 %v1456, %v1457
    %v1459 = vrot.slane %v1458, 1
    %v1460 = vadd.f32 %v1458, %v1459
    %v1461 = vadd.f32 %v1460, 0.0
    %v1462 = vmul.f32 %v1360, %v1360
    %v1463 = vmul.f32 %v1361, %v1361
    %v1464 = vmul.f32 %v1362, %v1362
    %v1465 = vmul.f32 %v1363, %v1363
    %v1466 = vmul.f32 %v1364, %v1364
    %v1467 = vmul.f32 %v1365, %v1365
    %v1468 = vmul.f32 %v1366, %v1366
    %v1469 = vmul.f32 %v1367, %v1367
    %v1470 = vmul.f32 %v1368, %v1368
    %v1471 = vmul.f32 %v1369, %v1369
    %v1472 = vmul.f32 %v1370, %v1370
    %v1473 = vmul.f32 %v1371, %v1371
    %v1474 = vmul.f32 %v1372, %v1372
    %v1475 = vmul.f32 %v1373, %v1373
    %v1476 = vmul.f32 %v1374, %v1374
    %v1477 = vmul.f32 %v1375, %v1375
    %v1478 = vmul.f32 %v1376, %v1376
    %v1479 = vmul.f32 %v1377, %v1377
    %v1480 = vmul.f32 %v1378, %v1378
    %v1481 = vmul.f32 %v1379, %v1379
    %v1482 = vmul.f32 %v1380, %v1380
    %v1483 = vmul.f32 %v1381, %v1381
    %v1484 = vmul.f32 %v1382, %v1382
    %v1485 = vmul.f32 %v1383, %v1383
    %v1486 = vmul.f32 %v1384, %v1384
    %v1487 = vmul.f32 %v1385, %v1385
    %v1488 = vmul.f32 %v1386, %v1386
    %v1489 = vmul.f32 %v1387, %v1387
    %v1490 = vmul.f32 %v1388, %v1388
    %v1491 = vmul.f32 %v1389, %v1389
    %v1492 = vmul.f32 %v1390, %v1390
    %v1493 = vmul.f32 %v1391, %v1391
    %v1494 = vsel %vm910, %v1462, 0.0
    %v1495 = vsel %vm910, %v1463, 0.0
    %v1496 = vadd.f32 %v1494, %v1495
    %v1497 = vsel %vm910, %v1464, 0.0
    %v1498 = vadd.f32 %v1496, %v1497
    %v1499 = vsel %vm910, %v1465, 0.0
    %v1500 = vadd.f32 %v1498, %v1499
    %v1501 = vsel %vm910, %v1466, 0.0
    %v1502 = vadd.f32 %v1500, %v1501
    %v1503 = vsel %vm910, %v1467, 0.0
    %v1504 = vadd.f32 %v1502, %v1503
    %v1505 = vsel %vm910, %v1468, 0.0
    %v1506 = vadd.f32 %v1504, %v1505
    %v1507 = vsel %vm910, %v1469, 0.0
    %v1508 = vadd.f32 %v1506, %v1507
    %v1509 = vsel %vm910, %v1470, 0.0
    %v1510 = vadd.f32 %v1508, %v1509
    %v1511 = vsel %vm910, %v1471, 0.0
    %v1512 = vadd.f32 %v1510, %v1511
    %v1513 = vsel %vm910, %v1472, 0.0
    %v1514 = vadd.f32 %v1512, %v1513
    %v1515 = vsel %vm910, %v1473, 0.0
    %v1516 = vadd.f32 %v1514, %v1515
    %v1517 = vsel %vm910, %v1474, 0.0
    %v1518 = vadd.f32 %v1516, %v1517
    %v1519 = vsel %vm910, %v1475, 0.0
    %v1520 = vadd.f32 %v1518, %v1519
    %v1521 = vsel %vm910, %v1476, 0.0
    %v1522 = vadd.f32 %v1520, %v1521
    %v1523 = vsel %vm910, %v1477, 0.0
    %v1524 = vadd.f32 %v1522, %v1523
    %v1525 = vsel %vm910, %v1478, 0.0
    %v1526 = vadd.f32 %v1524, %v1525
    %v1527 = vsel %vm910, %v1479, 0.0
    %v1528 = vadd.f32 %v1526, %v1527
    %v1529 = vsel %vm910, %v1480, 0.0
    %v1530 = vadd.f32 %v1528, %v1529
    %v1531 = vsel %vm910, %v1481, 0.0
    %v1532 = vadd.f32 %v1530, %v1531
    %v1533 = vsel %vm910, %v1482, 0.0
    %v1534 = vadd.f32 %v1532, %v1533
    %v1535 = vsel %vm910, %v1483, 0.0
    %v1536 = vadd.f32 %v1534, %v1535
    %v1537 = vsel %vm910, %v1484, 0.0
    %v1538 = vadd.f32 %v1536, %v1537
    %v1539 = vsel %vm910, %v1485, 0.0
    %v1540 = vadd.f32 %v1538, %v1539
    %v1541 = vsel %vm910, %v1486, 0.0
    %v1542 = vadd.f32 %v1540, %v1541
    %v1543 = vsel %vm910, %v1487, 0.0
    %v1544 = vadd.f32 %v1542, %v1543
    %v1545 = vsel %vm910, %v1488, 0.0
    %v1546 = vadd.f32 %v1544, %v1545
    %v1547 = vsel %vm910, %v1489, 0.0
    %v1548 = vadd.f32 %v1546, %v1547
    %v1549 = vsel %vm910, %v1490, 0.0
    %v1550 = vadd.f32 %v1548, %v1549
    %v1551 = vsel %vm910, %v1491, 0.0
    %v1552 = vadd.f32 %v1550, %v1551
    %v1553 = vsel %vm910, %v1492, 0.0
    %v1554 = vadd.f32 %v1552, %v1553
    %v1555 = vsel %vm910, %v1493, 0.0
    %v1556 = vadd.f32 %v1554, %v1555
    %v1557 = vrot.slane %v1556, 4
    %v1558 = vadd.f32 %v1556, %v1557
    %v1559 = vrot.slane %v1558, 2
    %v1560 = vadd.f32 %v1558, %v1559
    %v1561 = vrot.slane %v1560, 1
    %v1562 = vadd.f32 %v1560, %v1561
    %v1563 = vadd.f32 %v1562, 0.0
    %s1564 = scalar_lea.vmem %s0, 128
    %v1565 = vld [vmem:[%s1564] sm:$0xf]
    %v1566 = vld [vmem:[%s1564 + $0x4] sm:$0xf]
    %v1567 = vld [vmem:[%s1564 + $0x8] sm:$0xf]
    %v1568 = vld [vmem:[%s1564 + $0xc] sm:$0xf]
    %v1569 = vld [vmem:[%s1564 + $0x10] sm:$0xf]
    %v1570 = vld [vmem:[%s1564 + $0x14] sm:$0xf]
    %v1571 = vld [vmem:[%s1564 + $0x18] sm:$0xf]
    %v1572 = vld [vmem:[%s1564 + $0x1c] sm:$0xf]
    %v1573 = vld [vmem:[%s1564 + $0x20] sm:$0xf]
    %v1574 = vld [vmem:[%s1564 + $0x24] sm:$0xf]
    %v1575 = vld [vmem:[%s1564 + $0x28] sm:$0xf]
    %v1576 = vld [vmem:[%s1564 + $0x2c] sm:$0xf]
    %v1577 = vld [vmem:[%s1564 + $0x30] sm:$0xf]
    %v1578 = vld [vmem:[%s1564 + $0x34] sm:$0xf]
    %v1579 = vld [vmem:[%s1564 + $0x38] sm:$0xf]
    %v1580 = vld [vmem:[%s1564 + $0x3c] sm:$0xf]
    %v1581 = vld [vmem:[%s1564 + $0x40] sm:$0xf]
    %v1582 = vld [vmem:[%s1564 + $0x44] sm:$0xf]
    %v1583 = vld [vmem:[%s1564 + $0x48] sm:$0xf]
    %v1584 = vld [vmem:[%s1564 + $0x4c] sm:$0xf]
    %v1585 = vld [vmem:[%s1564 + $0x50] sm:$0xf]
    %v1586 = vld [vmem:[%s1564 + $0x54] sm:$0xf]
    %v1587 = vld [vmem:[%s1564 + $0x58] sm:$0xf]
    %v1588 = vld [vmem:[%s1564 + $0x5c] sm:$0xf]
    %v1589 = vld [vmem:[%s1564 + $0x60] sm:$0xf]
    %v1590 = vld [vmem:[%s1564 + $0x64] sm:$0xf]
    %v1591 = vld [vmem:[%s1564 + $0x68] sm:$0xf]
    %v1592 = vld [vmem:[%s1564 + $0x6c] sm:$0xf]
    %v1593 = vld [vmem:[%s1564 + $0x70] sm:$0xf]
    %v1594 = vld [vmem:[%s1564 + $0x74] sm:$0xf]
    %v1595 = vld [vmem:[%s1564 + $0x78] sm:$0xf]
    %v1596 = vld [vmem:[%s1564 + $0x7c] sm:$0xf]
    %v1629 = vunpack.c.l.b16 %v1565
    %v1630 = vunpack.c.l.b16 %v1566
    %v1631 = vunpack.c.l.b16 %v1567
    %v1632 = vunpack.c.l.b16 %v1568
    %v1633 = vunpack.c.l.b16 %v1569
    %v1634 = vunpack.c.l.b16 %v1570
    %v1635 = vunpack.c.l.b16 %v1571
    %v1636 = vunpack.c.l.b16 %v1572
    %v1637 = vunpack.c.l.b16 %v1573
    %v1638 = vunpack.c.l.b16 %v1574
    %v1639 = vunpack.c.l.b16 %v1575
    %v1640 = vunpack.c.l.b16 %v1576
    %v1641 = vunpack.c.l.b16 %v1577
    %v1642 = vunpack.c.l.b16 %v1578
    %v1643 = vunpack.c.l.b16 %v1579
    %v1644 = vunpack.c.l.b16 %v1580
    %v1645 = vunpack.c.l.b16 %v1581
    %v1646 = vunpack.c.l.b16 %v1582
    %v1647 = vunpack.c.l.b16 %v1583
    %v1648 = vunpack.c.l.b16 %v1584
    %v1649 = vunpack.c.l.b16 %v1585
    %v1650 = vunpack.c.l.b16 %v1586
    %v1651 = vunpack.c.l.b16 %v1587
    %v1652 = vunpack.c.l.b16 %v1588
    %v1653 = vunpack.c.l.b16 %v1589
    %v1654 = vunpack.c.l.b16 %v1590
    %v1655 = vunpack.c.l.b16 %v1591
    %v1656 = vunpack.c.l.b16 %v1592
    %v1657 = vunpack.c.l.b16 %v1593
    %v1658 = vunpack.c.l.b16 %v1594
    %v1659 = vunpack.c.l.b16 %v1595
    %v1660 = vunpack.c.l.b16 %v1596
    %v1661 = vpack.c.b16 %v1630, %v1629
    %v1662 = vpack.c.b16 %v1632, %v1631
    %v1663 = vpack.c.b16 %v1634, %v1633
    %v1664 = vpack.c.b16 %v1636, %v1635
    %v1665 = vpack.c.b16 %v1638, %v1637
    %v1666 = vpack.c.b16 %v1640, %v1639
    %v1667 = vpack.c.b16 %v1642, %v1641
    %v1668 = vpack.c.b16 %v1644, %v1643
    %v1669 = vpack.c.b16 %v1646, %v1645
    %v1670 = vpack.c.b16 %v1648, %v1647
    %v1671 = vpack.c.b16 %v1650, %v1649
    %v1672 = vpack.c.b16 %v1652, %v1651
    %v1673 = vpack.c.b16 %v1654, %v1653
    %v1674 = vpack.c.b16 %v1656, %v1655
    %v1675 = vpack.c.b16 %v1658, %v1657
    %v1676 = vpack.c.b16 %v1660, %v1659
    %v1678 = vshrl.u32 %v1661, 16
    %v1680 = vrot.slane %v1678, 7
    %v1681 = vshll.u32 %v1661, 16
    %v1683 = vor.u32 %v1680, %v1681
    %v1685 = vshrl.u32 %v1662, 16
    %v1687 = vrot.slane %v1685, 7
    %v1688 = vshll.u32 %v1662, 16
    %v1690 = vor.u32 %v1687, %v1688
    %v1692 = vshrl.u32 %v1663, 16
    %v1694 = vrot.slane %v1692, 7
    %v1695 = vshll.u32 %v1663, 16
    %v1697 = vor.u32 %v1694, %v1695
    %v1699 = vshrl.u32 %v1664, 16
    %v1701 = vrot.slane %v1699, 7
    %v1702 = vshll.u32 %v1664, 16
    %v1704 = vor.u32 %v1701, %v1702
    %v1706 = vshrl.u32 %v1665, 16
    %v1708 = vrot.slane %v1706, 7
    %v1709 = vshll.u32 %v1665, 16
    %v1711 = vor.u32 %v1708, %v1709
    %v1713 = vshrl.u32 %v1666, 16
    %v1715 = vrot.slane %v1713, 7
    %v1716 = vshll.u32 %v1666, 16
    %v1718 = vor.u32 %v1715, %v1716
    %v1720 = vshrl.u32 %v1667, 16
    %v1722 = vrot.slane %v1720, 7
    %v1723 = vshll.u32 %v1667, 16
    %v1725 = vor.u32 %v1722, %v1723
    %v1727 = vshrl.u32 %v1668, 16
    %v1729 = vrot.slane %v1727, 7
    %v1730 = vshll.u32 %v1668, 16
    %v1732 = vor.u32 %v1729, %v1730
    %v1734 = vshrl.u32 %v1669, 16
    %v1736 = vrot.slane %v1734, 7
    %v1737 = vshll.u32 %v1669, 16
    %v1739 = vor.u32 %v1736, %v1737
    %v1741 = vshrl.u32 %v1670, 16
    %v1743 = vrot.slane %v1741, 7
    %v1744 = vshll.u32 %v1670, 16
    %v1746 = vor.u32 %v1743, %v1744
    %v1748 = vshrl.u32 %v1671, 16
    %v1750 = vrot.slane %v1748, 7
    %v1751 = vshll.u32 %v1671, 16
    %v1753 = vor.u32 %v1750, %v1751
    %v1755 = vshrl.u32 %v1672, 16
    %v1757 = vrot.slane %v1755, 7
    %v1758 = vshll.u32 %v1672, 16
    %v1760 = vor.u32 %v1757, %v1758
    %v1762 = vshrl.u32 %v1673, 16
    %v1764 = vrot.slane %v1762, 7
    %v1765 = vshll.u32 %v1673, 16
    %v1767 = vor.u32 %v1764, %v1765
    %v1769 = vshrl.u32 %v1674, 16
    %v1771 = vrot.slane %v1769, 7
    %v1772 = vshll.u32 %v1674, 16
    %v1774 = vor.u32 %v1771, %v1772
    %v1776 = vshrl.u32 %v1675, 16
    %v1778 = vrot.slane %v1776, 7
    %v1779 = vshll.u32 %v1675, 16
    %v1781 = vor.u32 %v1778, %v1779
    %v1783 = vshrl.u32 %v1676, 16
    %v1785 = vrot.slane %v1783, 7
    %v1786 = vshll.u32 %v1676, 16
    %v1788 = vor.u32 %v1785, %v1786
    %v1821 = vsel %vm295, 0, %v1683
    %v1822 = vsel %vm295, 0, %v1690
    %v1823 = vsel %vm295, 0, %v1697
    %v1824 = vsel %vm295, 0, %v1704
    %v1825 = vsel %vm295, 0, %v1711
    %v1826 = vsel %vm295, 0, %v1718
    %v1827 = vsel %vm295, 0, %v1725
    %v1828 = vsel %vm295, 0, %v1732
    %v1829 = vsel %vm295, 0, %v1739
    %v1830 = vsel %vm295, 0, %v1746
    %v1831 = vsel %vm295, 0, %v1753
    %v1832 = vsel %vm295, 0, %v1760
    %v1833 = vsel %vm295, 0, %v1767
    %v1834 = vsel %vm295, 0, %v1774
    %v1835 = vsel %vm295, 0, %v1781
    %v1836 = vsel %vm295, 0, %v1788
    %v1837 = vsel %vm295, %v1680, 0
    %v1838 = vsel %vm295, %v1687, 0
    %v1839 = vsel %vm295, %v1694, 0
    %v1840 = vsel %vm295, %v1701, 0
    %v1841 = vsel %vm295, %v1708, 0
    %v1842 = vsel %vm295, %v1715, 0
    %v1843 = vsel %vm295, %v1722, 0
    %v1844 = vsel %vm295, %v1729, 0
    %v1845 = vsel %vm295, %v1736, 0
    %v1846 = vsel %vm295, %v1743, 0
    %v1847 = vsel %vm295, %v1750, 0
    %v1848 = vsel %vm295, %v1757, 0
    %v1849 = vsel %vm295, %v1764, 0
    %v1850 = vsel %vm295, %v1771, 0
    %v1851 = vsel %vm295, %v1778, 0
    %v1852 = vsel %vm295, %v1785, 0
    %v1854 = vshrl.u32 %v1821, 16
    %v1856 = vshll.u32 %v1821, 16
    %v1858 = vrot.slane %v1856, 1
    %v1859 = vor.u32 %v1854, %v1858
    %v1861 = vshll.u32 %v1837, 16
    %v1863 = vrot.slane %v1861, 1
    %v1864 = vsel %vm330, %v1859, %v1863
    %v1866 = vshrl.u32 %v1822, 16
    %v1868 = vshll.u32 %v1822, 16
    %v1870 = vrot.slane %v1868, 1
    %v1871 = vor.u32 %v1866, %v1870
    %v1873 = vshll.u32 %v1838, 16
    %v1875 = vrot.slane %v1873, 1
    %v1876 = vsel %vm330, %v1871, %v1875
    %v1878 = vshrl.u32 %v1823, 16
    %v1880 = vshll.u32 %v1823, 16
    %v1882 = vrot.slane %v1880, 1
    %v1883 = vor.u32 %v1878, %v1882
    %v1885 = vshll.u32 %v1839, 16
    %v1887 = vrot.slane %v1885, 1
    %v1888 = vsel %vm330, %v1883, %v1887
    %v1890 = vshrl.u32 %v1824, 16
    %v1892 = vshll.u32 %v1824, 16
    %v1894 = vrot.slane %v1892, 1
    %v1895 = vor.u32 %v1890, %v1894
    %v1897 = vshll.u32 %v1840, 16
    %v1899 = vrot.slane %v1897, 1
    %v1900 = vsel %vm330, %v1895, %v1899
    %v1902 = vshrl.u32 %v1825, 16
    %v1904 = vshll.u32 %v1825, 16
    %v1906 = vrot.slane %v1904, 1
    %v1907 = vor.u32 %v1902, %v1906
    %v1909 = vshll.u32 %v1841, 16
    %v1911 = vrot.slane %v1909, 1
    %v1912 = vsel %vm330, %v1907, %v1911
    %v1914 = vshrl.u32 %v1826, 16
    %v1916 = vshll.u32 %v1826, 16
    %v1918 = vrot.slane %v1916, 1
    %v1919 = vor.u32 %v1914, %v1918
    %v1921 = vshll.u32 %v1842, 16
    %v1923 = vrot.slane %v1921, 1
    %v1924 = vsel %vm330, %v1919, %v1923
    %v1926 = vshrl.u32 %v1827, 16
    %v1928 = vshll.u32 %v1827, 16
    %v1930 = vrot.slane %v1928, 1
    %v1931 = vor.u32 %v1926, %v1930
    %v1933 = vshll.u32 %v1843, 16
    %v1935 = vrot.slane %v1933, 1
    %v1936 = vsel %vm330, %v1931, %v1935
    %v1938 = vshrl.u32 %v1828, 16
    %v1940 = vshll.u32 %v1828, 16
    %v1942 = vrot.slane %v1940, 1
    %v1943 = vor.u32 %v1938, %v1942
    %v1945 = vshll.u32 %v1844, 16
    %v1947 = vrot.slane %v1945, 1
    %v1948 = vsel %vm330, %v1943, %v1947
    %v1950 = vshrl.u32 %v1829, 16
    %v1952 = vshll.u32 %v1829, 16
    %v1954 = vrot.slane %v1952, 1
    %v1955 = vor.u32 %v1950, %v1954
    %v1957 = vshll.u32 %v1845, 16
    %v1959 = vrot.slane %v1957, 1
    %v1960 = vsel %vm330, %v1955, %v1959
    %v1962 = vshrl.u32 %v1830, 16
    %v1964 = vshll.u32 %v1830, 16
    %v1966 = vrot.slane %v1964, 1
    %v1967 = vor.u32 %v1962, %v1966
    %v1969 = vshll.u32 %v1846, 16
    %v1971 = vrot.slane %v1969, 1
    %v1972 = vsel %vm330, %v1967, %v1971
    %v1974 = vshrl.u32 %v1831, 16
    %v1976 = vshll.u32 %v1831, 16
    %v1978 = vrot.slane %v1976, 1
    %v1979 = vor.u32 %v1974, %v1978
    %v1981 = vshll.u32 %v1847, 16
    %v1983 = vrot.slane %v1981, 1
    %v1984 = vsel %vm330, %v1979, %v1983
    %v1986 = vshrl.u32 %v1832, 16
    %v1988 = vshll.u32 %v1832, 16
    %v1990 = vrot.slane %v1988, 1
    %v1991 = vor.u32 %v1986, %v1990
    %v1993 = vshll.u32 %v1848, 16
    %v1995 = vrot.slane %v1993, 1
    %v1996 = vsel %vm330, %v1991, %v1995
    %v1998 = vshrl.u32 %v1833, 16
    %v2000 = vshll.u32 %v1833, 16
    %v2002 = vrot.slane %v2000, 1
    %v2003 = vor.u32 %v1998, %v2002
    %v2005 = vshll.u32 %v1849, 16
    %v2007 = vrot.slane %v2005, 1
    %v2008 = vsel %vm330, %v2003, %v2007
    %v2010 = vshrl.u32 %v1834, 16
    %v2012 = vshll.u32 %v1834, 16
    %v2014 = vrot.slane %v2012, 1
    %v2015 = vor.u32 %v2010, %v2014
    %v2017 = vshll.u32 %v1850, 16
    %v2019 = vrot.slane %v2017, 1
    %v2020 = vsel %vm330, %v2015, %v2019
    %v2022 = vshrl.u32 %v1835, 16
    %v2024 = vshll.u32 %v1835, 16
    %v2026 = vrot.slane %v2024, 1
    %v2027 = vor.u32 %v2022, %v2026
    %v2029 = vshll.u32 %v1851, 16
    %v2031 = vrot.slane %v2029, 1
    %v2032 = vsel %vm330, %v2027, %v2031
    %v2063 = vrot.slane %v1821, 1
    %v2064 = vrot.slane %v1837, 1
    %v2065 = vsel %vm555, %v2063, %v2064
    %v2066 = vrot.slane %v1822, 1
    %v2067 = vrot.slane %v1838, 1
    %v2068 = vsel %vm555, %v2066, %v2067
    %v2069 = vrot.slane %v1823, 1
    %v2070 = vrot.slane %v1839, 1
    %v2071 = vsel %vm555, %v2069, %v2070
    %v2072 = vrot.slane %v1824, 1
    %v2073 = vrot.slane %v1840, 1
    %v2074 = vsel %vm555, %v2072, %v2073
    %v2075 = vrot.slane %v1825, 1
    %v2076 = vrot.slane %v1841, 1
    %v2077 = vsel %vm555, %v2075, %v2076
    %v2078 = vrot.slane %v1826, 1
    %v2079 = vrot.slane %v1842, 1
    %v2080 = vsel %vm555, %v2078, %v2079
    %v2081 = vrot.slane %v1827, 1
    %v2082 = vrot.slane %v1843, 1
    %v2083 = vsel %vm555, %v2081, %v2082
    %v2084 = vrot.slane %v1828, 1
    %v2085 = vrot.slane %v1844, 1
    %v2086 = vsel %vm555, %v2084, %v2085
    %v2087 = vrot.slane %v1829, 1
    %v2088 = vrot.slane %v1845, 1
    %v2089 = vsel %vm555, %v2087, %v2088
    %v2090 = vrot.slane %v1830, 1
    %v2091 = vrot.slane %v1846, 1
    %v2092 = vsel %vm555, %v2090, %v2091
    %v2093 = vrot.slane %v1831, 1
    %v2094 = vrot.slane %v1847, 1
    %v2095 = vsel %vm555, %v2093, %v2094
    %v2096 = vrot.slane %v1832, 1
    %v2097 = vrot.slane %v1848, 1
    %v2098 = vsel %vm555, %v2096, %v2097
    %v2099 = vrot.slane %v1833, 1
    %v2100 = vrot.slane %v1849, 1
    %v2101 = vsel %vm555, %v2099, %v2100
    %v2102 = vrot.slane %v1834, 1
    %v2103 = vrot.slane %v1850, 1
    %v2104 = vsel %vm555, %v2102, %v2103
    %v2105 = vrot.slane %v1835, 1
    %v2106 = vrot.slane %v1851, 1
    %v2107 = vsel %vm555, %v2105, %v2106
    %v2109 = vshrl.u32 %v1836, 16
    %v2111 = vshll.u32 %v1836, 16
    %v2113 = vrot.slane %v2111, 1
    %v2114 = vor.u32 %v2109, %v2113
    %v2116 = vshll.u32 %v1852, 16
    %v2118 = vrot.slane %v2116, 1
    %v2119 = vsel %vm330, %v2114, %v2118
    %v2122 = vrot.slane %v1836, 1
    %v2123 = vrot.slane %v1852, 1
    %v2124 = vsel %vm555, %v2122, %v2123
    %2125 = vrot.lane.b32.xlu0 %v1864, 4
    %v2126 = vpop.permute.xlu0 %2125
    %2127 = vrot.lane.b32.xlu0 %v1876, 4
    %v2128 = vpop.permute.xlu0 %2127
    %2129 = vrot.lane.b32.xlu0 %v1888, 4
    %v2130 = vpop.permute.xlu0 %2129
    %2131 = vrot.lane.b32.xlu0 %v1900, 4
    %v2132 = vpop.permute.xlu0 %2131
    %2133 = vrot.lane.b32.xlu0 %v1912, 4
    %v2134 = vpop.permute.xlu0 %2133
    %2135 = vrot.lane.b32.xlu0 %v1924, 4
    %v2136 = vpop.permute.xlu0 %2135
    %2137 = vrot.lane.b32.xlu0 %v1936, 4
    %v2138 = vpop.permute.xlu0 %2137
    %2139 = vrot.lane.b32.xlu0 %v1948, 4
    %v2140 = vpop.permute.xlu0 %2139
    %2141 = vrot.lane.b32.xlu0 %v1960, 4
    %v2142 = vpop.permute.xlu0 %2141
    %2143 = vrot.lane.b32.xlu0 %v1972, 4
    %v2144 = vpop.permute.xlu0 %2143
    %2145 = vrot.lane.b32.xlu0 %v1984, 4
    %v2146 = vpop.permute.xlu0 %2145
    %2147 = vrot.lane.b32.xlu0 %v1996, 4
    %v2148 = vpop.permute.xlu0 %2147
    %2149 = vrot.lane.b32.xlu0 %v2008, 4
    %v2150 = vpop.permute.xlu0 %2149
    %2151 = vrot.lane.b32.xlu0 %v2020, 4
    %v2152 = vpop.permute.xlu0 %2151
    %2153 = vrot.lane.b32.xlu0 %v2032, 4
    %v2154 = vpop.permute.xlu0 %2153
    %2155 = vrot.lane.b32.xlu0 %v2065, 8
    %v2156 = vpop.permute.xlu0 %2155
    %2157 = vrot.lane.b32.xlu0 %v2068, 8
    %v2158 = vpop.permute.xlu0 %2157
    %2159 = vrot.lane.b32.xlu0 %v2071, 8
    %v2160 = vpop.permute.xlu0 %2159
    %2161 = vrot.lane.b32.xlu0 %v2074, 8
    %v2162 = vpop.permute.xlu0 %2161
    %2163 = vrot.lane.b32.xlu0 %v2077, 8
    %v2164 = vpop.permute.xlu0 %2163
    %2165 = vrot.lane.b32.xlu0 %v2080, 8
    %v2166 = vpop.permute.xlu0 %2165
    %2167 = vrot.lane.b32.xlu0 %v2083, 8
    %v2168 = vpop.permute.xlu0 %2167
    %2169 = vrot.lane.b32.xlu0 %v2086, 8
    %v2170 = vpop.permute.xlu0 %2169
    %2171 = vrot.lane.b32.xlu0 %v2089, 8
    %v2172 = vpop.permute.xlu0 %2171
    %2173 = vrot.lane.b32.xlu0 %v2092, 8
    %v2174 = vpop.permute.xlu0 %2173
    %2175 = vrot.lane.b32.xlu0 %v2095, 8
    %v2176 = vpop.permute.xlu0 %2175
    %2177 = vrot.lane.b32.xlu0 %v2098, 8
    %v2178 = vpop.permute.xlu0 %2177
    %2179 = vrot.lane.b32.xlu0 %v2101, 8
    %v2180 = vpop.permute.xlu0 %2179
    %2181 = vrot.lane.b32.xlu0 %v2104, 8
    %v2182 = vpop.permute.xlu0 %2181
    %2183 = vrot.lane.b32.xlu0 %v2107, 8
    %v2184 = vpop.permute.xlu0 %2183
    %2185 = vrot.lane.b32.xlu0 %v1821, 12
    %v2186 = vpop.permute.xlu0 %2185
    %2187 = vrot.lane.b32.xlu0 %v1822, 12
    %v2188 = vpop.permute.xlu0 %2187
    %2189 = vrot.lane.b32.xlu0 %v1823, 12
    %v2190 = vpop.permute.xlu0 %2189
    %2191 = vrot.lane.b32.xlu0 %v1824, 12
    %v2192 = vpop.permute.xlu0 %2191
    %2193 = vrot.lane.b32.xlu0 %v1825, 12
    %v2194 = vpop.permute.xlu0 %2193
    %2195 = vrot.lane.b32.xlu0 %v1826, 12
    %v2196 = vpop.permute.xlu0 %2195
    %2197 = vrot.lane.b32.xlu0 %v1827, 12
    %v2198 = vpop.permute.xlu0 %2197
    %2199 = vrot.lane.b32.xlu0 %v1828, 12
    %v2200 = vpop.permute.xlu0 %2199
    %2201 = vrot.lane.b32.xlu0 %v1829, 12
    %v2202 = vpop.permute.xlu0 %2201
    %2203 = vrot.lane.b32.xlu0 %v1830, 12
    %v2204 = vpop.permute.xlu0 %2203
    %2205 = vrot.lane.b32.xlu0 %v1831, 12
    %v2206 = vpop.permute.xlu0 %2205
    %2207 = vrot.lane.b32.xlu0 %v1832, 12
    %v2208 = vpop.permute.xlu0 %2207
    %2209 = vrot.lane.b32.xlu0 %v1833, 12
    %v2210 = vpop.permute.xlu0 %2209
    %2211 = vrot.lane.b32.xlu0 %v1834, 12
    %v2212 = vpop.permute.xlu0 %2211
    %2213 = vrot.lane.b32.xlu0 %v1835, 12
    %v2214 = vpop.permute.xlu0 %2213
    %2215 = vrot.lane.b32.xlu0 %v1836, 12
    %v2216 = vpop.permute.xlu0 %2215
    %2217 = vrot.lane.b32.xlu0 %v1864, 16
    %v2218 = vpop.permute.xlu0 %2217
    %2219 = vrot.lane.b32.xlu0 %v1876, 16
    %v2220 = vpop.permute.xlu0 %2219
    %2221 = vrot.lane.b32.xlu0 %v1888, 16
    %v2222 = vpop.permute.xlu0 %2221
    %2223 = vrot.lane.b32.xlu0 %v1900, 16
    %v2224 = vpop.permute.xlu0 %2223
    %2225 = vrot.lane.b32.xlu0 %v1912, 16
    %v2226 = vpop.permute.xlu0 %2225
    %2227 = vrot.lane.b32.xlu0 %v1924, 16
    %v2228 = vpop.permute.xlu0 %2227
    %2229 = vrot.lane.b32.xlu0 %v1936, 16
    %v2230 = vpop.permute.xlu0 %2229
    %2231 = vrot.lane.b32.xlu0 %v1948, 16
    %v2232 = vpop.permute.xlu0 %2231
    %2233 = vrot.lane.b32.xlu0 %v1960, 16
    %v2234 = vpop.permute.xlu0 %2233
    %2235 = vrot.lane.b32.xlu0 %v1972, 16
    %v2236 = vpop.permute.xlu0 %2235
    %2237 = vrot.lane.b32.xlu0 %v1984, 16
    %v2238 = vpop.permute.xlu0 %2237
    %2239 = vrot.lane.b32.xlu0 %v1996, 16
    %v2240 = vpop.permute.xlu0 %2239
    %2241 = vrot.lane.b32.xlu0 %v2008, 16
    %v2242 = vpop.permute.xlu0 %2241
    %2243 = vrot.lane.b32.xlu0 %v2020, 16
    %v2244 = vpop.permute.xlu0 %2243
    %2245 = vrot.lane.b32.xlu0 %v2032, 16
    %v2246 = vpop.permute.xlu0 %2245
    %2247 = vrot.lane.b32.xlu0 %v2119, 16
    %v2248 = vpop.permute.xlu0 %2247
    %2249 = vrot.lane.b32.xlu0 %v2065, 20
    %v2250 = vpop.permute.xlu0 %2249
    %2251 = vrot.lane.b32.xlu0 %v2068, 20
    %v2252 = vpop.permute.xlu0 %2251
    %2253 = vrot.lane.b32.xlu0 %v2071, 20
    %v2254 = vpop.permute.xlu0 %2253
    %2255 = vrot.lane.b32.xlu0 %v2074, 20
    %v2256 = vpop.permute.xlu0 %2255
    %2257 = vrot.lane.b32.xlu0 %v2077, 20
    %v2258 = vpop.permute.xlu0 %2257
    %2259 = vrot.lane.b32.xlu0 %v2080, 20
    %v2260 = vpop.permute.xlu0 %2259
    %2261 = vrot.lane.b32.xlu0 %v2083, 20
    %v2262 = vpop.permute.xlu0 %2261
    %2263 = vrot.lane.b32.xlu0 %v2086, 20
    %v2264 = vpop.permute.xlu0 %2263
    %2265 = vrot.lane.b32.xlu0 %v2089, 20
    %v2266 = vpop.permute.xlu0 %2265
    %2267 = vrot.lane.b32.xlu0 %v2092, 20
    %v2268 = vpop.permute.xlu0 %2267
    %2269 = vrot.lane.b32.xlu0 %v2095, 20
    %v2270 = vpop.permute.xlu0 %2269
    %2271 = vrot.lane.b32.xlu0 %v2098, 20
    %v2272 = vpop.permute.xlu0 %2271
    %2273 = vrot.lane.b32.xlu0 %v2101, 20
    %v2274 = vpop.permute.xlu0 %2273
    %2275 = vrot.lane.b32.xlu0 %v2104, 20
    %v2276 = vpop.permute.xlu0 %2275
    %2277 = vrot.lane.b32.xlu0 %v2107, 20
    %v2278 = vpop.permute.xlu0 %2277
    %2279 = vrot.lane.b32.xlu0 %v2124, 20
    %v2280 = vpop.permute.xlu0 %2279
    %2281 = vrot.lane.b32.xlu0 %v1822, 24
    %v2282 = vpop.permute.xlu0 %2281
    %2283 = vrot.lane.b32.xlu0 %v1823, 24
    %v2284 = vpop.permute.xlu0 %2283
    %2285 = vrot.lane.b32.xlu0 %v1824, 24
    %v2286 = vpop.permute.xlu0 %2285
    %2287 = vrot.lane.b32.xlu0 %v1825, 24
    %v2288 = vpop.permute.xlu0 %2287
    %2289 = vrot.lane.b32.xlu0 %v1826, 24
    %v2290 = vpop.permute.xlu0 %2289
    %2291 = vrot.lane.b32.xlu0 %v1827, 24
    %v2292 = vpop.permute.xlu0 %2291
    %2293 = vrot.lane.b32.xlu0 %v1828, 24
    %v2294 = vpop.permute.xlu0 %2293
    %2295 = vrot.lane.b32.xlu0 %v1829, 24
    %v2296 = vpop.permute.xlu0 %2295
    %2297 = vrot.lane.b32.xlu0 %v1830, 24
    %v2298 = vpop.permute.xlu0 %2297
    %2299 = vrot.lane.b32.xlu0 %v1831, 24
    %v2300 = vpop.permute.xlu0 %2299
    %2301 = vrot.lane.b32.xlu0 %v1832, 24
    %v2302 = vpop.permute.xlu0 %2301
    %2303 = vrot.lane.b32.xlu0 %v1833, 24
    %v2304 = vpop.permute.xlu0 %2303
    %2305 = vrot.lane.b32.xlu0 %v1834, 24
    %v2306 = vpop.permute.xlu0 %2305
    %2307 = vrot.lane.b32.xlu0 %v1835, 24
    %v2308 = vpop.permute.xlu0 %2307
    %2309 = vrot.lane.b32.xlu0 %v1836, 24
    %v2310 = vpop.permute.xlu0 %2309
    %2311 = vrot.lane.b32.xlu0 %v1876, 28
    %v2312 = vpop.permute.xlu0 %2311
    %2313 = vrot.lane.b32.xlu0 %v1888, 28
    %v2314 = vpop.permute.xlu0 %2313
    %2315 = vrot.lane.b32.xlu0 %v1900, 28
    %v2316 = vpop.permute.xlu0 %2315
    %2317 = vrot.lane.b32.xlu0 %v1912, 28
    %v2318 = vpop.permute.xlu0 %2317
    %2319 = vrot.lane.b32.xlu0 %v1924, 28
    %v2320 = vpop.permute.xlu0 %2319
    %2321 = vrot.lane.b32.xlu0 %v1936, 28
    %v2322 = vpop.permute.xlu0 %2321
    %2323 = vrot.lane.b32.xlu0 %v1948, 28
    %v2324 = vpop.permute.xlu0 %2323
    %2325 = vrot.lane.b32.xlu0 %v1960, 28
    %v2326 = vpop.permute.xlu0 %2325
    %2327 = vrot.lane.b32.xlu0 %v1972, 28
    %v2328 = vpop.permute.xlu0 %2327
    %2329 = vrot.lane.b32.xlu0 %v1984, 28
    %v2330 = vpop.permute.xlu0 %2329
    %2331 = vrot.lane.b32.xlu0 %v1996, 28
    %v2332 = vpop.permute.xlu0 %2331
    %2333 = vrot.lane.b32.xlu0 %v2008, 28
    %v2334 = vpop.permute.xlu0 %2333
    %2335 = vrot.lane.b32.xlu0 %v2020, 28
    %v2336 = vpop.permute.xlu0 %2335
    %2337 = vrot.lane.b32.xlu0 %v2032, 28
    %v2338 = vpop.permute.xlu0 %2337
    %2339 = vrot.lane.b32.xlu0 %v2119, 28
    %v2340 = vpop.permute.xlu0 %2339
    %2341 = vrot.lane.b32.xlu0 %v2068, 32
    %v2342 = vpop.permute.xlu0 %2341
    %2343 = vrot.lane.b32.xlu0 %v2071, 32
    %v2344 = vpop.permute.xlu0 %2343
    %2345 = vrot.lane.b32.xlu0 %v2074, 32
    %v2346 = vpop.permute.xlu0 %2345
    %2347 = vrot.lane.b32.xlu0 %v2077, 32
    %v2348 = vpop.permute.xlu0 %2347
    %2349 = vrot.lane.b32.xlu0 %v2080, 32
    %v2350 = vpop.permute.xlu0 %2349
    %2351 = vrot.lane.b32.xlu0 %v2083, 32
    %v2352 = vpop.permute.xlu0 %2351
    %2353 = vrot.lane.b32.xlu0 %v2086, 32
    %v2354 = vpop.permute.xlu0 %2353
    %2355 = vrot.lane.b32.xlu0 %v2089, 32
    %v2356 = vpop.permute.xlu0 %2355
    %2357 = vrot.lane.b32.xlu0 %v2092, 32
    %v2358 = vpop.permute.xlu0 %2357
    %2359 = vrot.lane.b32.xlu0 %v2095, 32
    %v2360 = vpop.permute.xlu0 %2359
    %2361 = vrot.lane.b32.xlu0 %v2098, 32
    %v2362 = vpop.permute.xlu0 %2361
    %2363 = vrot.lane.b32.xlu0 %v2101, 32
    %v2364 = vpop.permute.xlu0 %2363
    %2365 = vrot.lane.b32.xlu0 %v2104, 32
    %v2366 = vpop.permute.xlu0 %2365
    %2367 = vrot.lane.b32.xlu0 %v2107, 32
    %v2368 = vpop.permute.xlu0 %2367
    %2369 = vrot.lane.b32.xlu0 %v2124, 32
    %v2370 = vpop.permute.xlu0 %2369
    %v2372 = vsel %vm877, %v1821, %v2126
    %v2374 = vsel %vm877, %v1822, %v2128
    %v2376 = vsel %vm877, %v1823, %v2130
    %v2378 = vsel %vm877, %v1824, %v2132
    %v2380 = vsel %vm877, %v1825, %v2134
    %v2382 = vsel %vm877, %v1826, %v2136
    %v2384 = vsel %vm877, %v1827, %v2138
    %v2386 = vsel %vm877, %v1828, %v2140
    %v2388 = vsel %vm877, %v1829, %v2142
    %v2390 = vsel %vm877, %v1830, %v2144
    %v2392 = vsel %vm877, %v1831, %v2146
    %v2394 = vsel %vm877, %v1832, %v2148
    %v2396 = vsel %vm877, %v1833, %v2150
    %v2398 = vsel %vm877, %v1834, %v2152
    %v2400 = vsel %vm877, %v1835, %v2154
    %v2402 = vsel %vm910, %v2372, %v2156
    %v2404 = vsel %vm910, %v2374, %v2158
    %v2406 = vsel %vm910, %v2376, %v2160
    %v2408 = vsel %vm910, %v2378, %v2162
    %v2410 = vsel %vm910, %v2380, %v2164
    %v2412 = vsel %vm910, %v2382, %v2166
    %v2414 = vsel %vm910, %v2384, %v2168
    %v2416 = vsel %vm910, %v2386, %v2170
    %v2418 = vsel %vm910, %v2388, %v2172
    %v2420 = vsel %vm910, %v2390, %v2174
    %v2422 = vsel %vm910, %v2392, %v2176
    %v2424 = vsel %vm910, %v2394, %v2178
    %v2426 = vsel %vm910, %v2396, %v2180
    %v2428 = vsel %vm910, %v2398, %v2182
    %v2430 = vsel %vm910, %v2400, %v2184
    %v2432 = vsel %vm943, %v912, %v2186
    %v2434 = vsel %vm943, %v2402, %v2188
    %v2436 = vsel %vm943, %v2404, %v2190
    %v2438 = vsel %vm943, %v2406, %v2192
    %v2440 = vsel %vm943, %v2408, %v2194
    %v2442 = vsel %vm943, %v2410, %v2196
    %v2444 = vsel %vm943, %v2412, %v2198
    %v2446 = vsel %vm943, %v2414, %v2200
    %v2448 = vsel %vm943, %v2416, %v2202
    %v2450 = vsel %vm943, %v2418, %v2204
    %v2452 = vsel %vm943, %v2420, %v2206
    %v2454 = vsel %vm943, %v2422, %v2208
    %v2456 = vsel %vm943, %v2424, %v2210
    %v2458 = vsel %vm943, %v2426, %v2212
    %v2460 = vsel %vm943, %v2428, %v2214
    %v2462 = vsel %vm943, %v2430, %v2216
    %v2464 = vsel %vm976, %v2432, %v2218
    %v2466 = vsel %vm976, %v2434, %v2220
    %v2468 = vsel %vm976, %v2436, %v2222
    %v2470 = vsel %vm976, %v2438, %v2224
    %v2472 = vsel %vm976, %v2440, %v2226
    %v2474 = vsel %vm976, %v2442, %v2228
    %v2476 = vsel %vm976, %v2444, %v2230
    %v2478 = vsel %vm976, %v2446, %v2232
    %v2480 = vsel %vm976, %v2448, %v2234
    %v2482 = vsel %vm976, %v2450, %v2236
    %v2484 = vsel %vm976, %v2452, %v2238
    %v2486 = vsel %vm976, %v2454, %v2240
    %v2488 = vsel %vm976, %v2456, %v2242
    %v2490 = vsel %vm976, %v2458, %v2244
    %v2492 = vsel %vm976, %v2460, %v2246
    %v2494 = vsel %vm976, %v2462, %v2248
    %v2496 = vsel %vm1009, %v2464, %v2250
    %v2498 = vsel %vm1009, %v2466, %v2252
    %v2500 = vsel %vm1009, %v2468, %v2254
    %v2502 = vsel %vm1009, %v2470, %v2256
    %v2504 = vsel %vm1009, %v2472, %v2258
    %v2506 = vsel %vm1009, %v2474, %v2260
    %v2508 = vsel %vm1009, %v2476, %v2262
    %v2510 = vsel %vm1009, %v2478, %v2264
    %v2512 = vsel %vm1009, %v2480, %v2266
    %v2514 = vsel %vm1009, %v2482, %v2268
    %v2516 = vsel %vm1009, %v2484, %v2270
    %v2518 = vsel %vm1009, %v2486, %v2272
    %v2520 = vsel %vm1009, %v2488, %v2274
    %v2522 = vsel %vm1009, %v2490, %v2276
    %v2524 = vsel %vm1009, %v2492, %v2278
    %v2526 = vsel %vm1009, %v2494, %v2280
    %v2528 = vsel %vm1042, %v2496, %v2282
    %v2530 = vsel %vm1042, %v2498, %v2284
    %v2532 = vsel %vm1042, %v2500, %v2286
    %v2534 = vsel %vm1042, %v2502, %v2288
    %v2536 = vsel %vm1042, %v2504, %v2290
    %v2538 = vsel %vm1042, %v2506, %v2292
    %v2540 = vsel %vm1042, %v2508, %v2294
    %v2542 = vsel %vm1042, %v2510, %v2296
    %v2544 = vsel %vm1042, %v2512, %v2298
    %v2546 = vsel %vm1042, %v2514, %v2300
    %v2548 = vsel %vm1042, %v2516, %v2302
    %v2550 = vsel %vm1042, %v2518, %v2304
    %v2552 = vsel %vm1042, %v2520, %v2306
    %v2554 = vsel %vm1042, %v2522, %v2308
    %v2556 = vsel %vm1042, %v2524, %v2310
    %v2557 = vsel %vm1042, %v2526, %v812
    %v2559 = vsel %vm1075, %v2528, %v2312
    %v2561 = vsel %vm1075, %v2530, %v2314
    %v2563 = vsel %vm1075, %v2532, %v2316
    %v2565 = vsel %vm1075, %v2534, %v2318
    %v2567 = vsel %vm1075, %v2536, %v2320
    %v2569 = vsel %vm1075, %v2538, %v2322
    %v2571 = vsel %vm1075, %v2540, %v2324
    %v2573 = vsel %vm1075, %v2542, %v2326
    %v2575 = vsel %vm1075, %v2544, %v2328
    %v2577 = vsel %vm1075, %v2546, %v2330
    %v2579 = vsel %vm1075, %v2548, %v2332
    %v2581 = vsel %vm1075, %v2550, %v2334
    %v2583 = vsel %vm1075, %v2552, %v2336
    %v2585 = vsel %vm1075, %v2554, %v2338
    %v2587 = vsel %vm1075, %v2556, %v2340
    %v2588 = vsel %vm1075, %v2557, %v844
    %v2590 = vsel %vm1108, %v2559, %v2342
    %v2592 = vsel %vm1108, %v2561, %v2344
    %v2594 = vsel %vm1108, %v2563, %v2346
    %v2596 = vsel %vm1108, %v2565, %v2348
    %v2598 = vsel %vm1108, %v2567, %v2350
    %v2600 = vsel %vm1108, %v2569, %v2352
    %v2602 = vsel %vm1108, %v2571, %v2354
    %v2604 = vsel %vm1108, %v2573, %v2356
    %v2606 = vsel %vm1108, %v2575, %v2358
    %v2608 = vsel %vm1108, %v2577, %v2360
    %v2610 = vsel %vm1108, %v2579, %v2362
    %v2612 = vsel %vm1108, %v2581, %v2364
    %v2614 = vsel %vm1108, %v2583, %v2366
    %v2616 = vsel %vm1108, %v2585, %v2368
    %v2618 = vsel %vm1108, %v2587, %v2370
    %v2619 = vsel %vm1108, %v2588, %v876
    %v2620 = vsel %vm1162, %v2590, 0
    %v2622 = vsel %vm1162, %v2592, 0
    %v2624 = vsel %vm1162, %v2594, 0
    %v2626 = vsel %vm1162, %v2596, 0
    %v2628 = vsel %vm1162, %v2598, 0
    %v2630 = vsel %vm1162, %v2600, 0
    %v2632 = vsel %vm1162, %v2602, 0
    %v2634 = vsel %vm1162, %v2604, 0
    %v2636 = vsel %vm1162, %v2606, 0
    %v2638 = vsel %vm1162, %v2608, 0
    %v2640 = vsel %vm1162, %v2610, 0
    %v2642 = vsel %vm1162, %v2612, 0
    %v2644 = vsel %vm1162, %v2614, 0
    %v2646 = vsel %vm1162, %v2616, 0
    %v2648 = vsel %vm1162, %v2618, 0
    %v2650 = vsel %vm1162, %v2619, 0
    %2652 = vmatprep.subr.bf16.mxu0 0
    %2653 = vmatpush1.bf16.msra.mxu0 %v1157
    %2654 = vmatprep.subr.bf16.mxu0 0
    %2655 = vmatpush1.bf16.msra.mxu0 %v1158
    %2656 = vmatprep.subr.bf16.mxu0 0
    %2657 = vmatpush1.bf16.msra.mxu0 %v1197
    %2658 = vmatprep.subr.bf16.mxu0 0
    %2659 = vmatpush1.bf16.msra.mxu0 0
    %2660 = vmatprep.subr.bf16.mxu0 0
    %2661 = vmatpush1.bf16.msra.mxu0 0
    %2662 = vmatprep.subr.bf16.mxu0 0
    %2663 = vmatpush1.bf16.msra.mxu0 0
    %2664 = vmatprep.subr.bf16.mxu0 0
    %2665 = vmatpush1.bf16.msra.mxu0 0
    %2666 = vmatprep.subr.bf16.mxu0 0
    %2667 = vmatpush1.bf16.msra.mxu0 0
    %2668 = vmatprep.subr.bf16.mxu0 0
    %2669 = vmatpush1.bf16.msra.mxu0 0
    %2670 = vmatprep.subr.bf16.mxu0 0
    %2671 = vmatpush1.bf16.msra.mxu0 0
    %2672 = vmatprep.subr.bf16.mxu0 0
    %2673 = vmatpush1.bf16.msra.mxu0 0
    %2674 = vmatprep.subr.bf16.mxu0 0
    %2675 = vmatpush1.bf16.msra.mxu0 0
    %2676 = vmatprep.subr.bf16.mxu0 0
    %2677 = vmatpush1.bf16.msra.mxu0 0
    %2678 = vmatprep.subr.bf16.mxu0 0
    %2679 = vmatpush1.bf16.msra.mxu0 0
    %2680 = vmatprep.subr.bf16.mxu0 0
    %2681 = vmatpush1.bf16.msra.mxu0 0
    %2682 = vmatprep.subr.bf16.mxu0 0
    %2683 = vmatpush1.bf16.msra.mxu0 0
    %2684 = vmatprep.mubr.bf16.mxu0 0
    %2685 = vmatmul.mubr.bf16.gmra.mrb[0].mxu0 %v2620
    %v2686 = vpop.f32.mrb[0].mxu0
    %v2687 = vadd.f32 %v1145, %v2686
    %v2688 = vpop.f32.mrb[0].mxu0
    %v2689 = vpop.f32.mrb[0].mxu0
    %v2690 = vadd.f32 %v1145, %v2689
    %v2691 = vpop.f32.mrb[0].mxu0
    %2692 = vmatprep.mubr.bf16.mxu0 0
    %2693 = vmatmul.mubr.bf16.gmra.mrb[0].mxu0 %v2622
    %v2694 = vpop.f32.mrb[0].mxu0
    %v2695 = vadd.f32 %v1145, %v2694
    %v2696 = vpop.f32.mrb[0].mxu0
    %v2697 = vpop.f32.mrb[0].mxu0
    %v2698 = vadd.f32 %v1145, %v2697
    %v2699 = vpop.f32.mrb[0].mxu0
    %2700 = vmatprep.mubr.bf16.mxu0 0
    %2701 = vmatmul.mubr.bf16.gmra.mrb[0].mxu0 %v2624
    %v2702 = vpop.f32.mrb[0].mxu0
    %v2703 = vadd.f32 %v1145, %v2702
    %v2704 = vpop.f32.mrb[0].mxu0
    %v2705 = vpop.f32.mrb[0].mxu0
    %v2706 = vadd.f32 %v1145, %v2705
    %v2707 = vpop.f32.mrb[0].mxu0
    %2708 = vmatprep.mubr.bf16.mxu0 0
    %2709 = vmatmul.mubr.bf16.gmra.mrb[0].mxu0 %v2626
    %v2710 = vpop.f32.mrb[0].mxu0
    %v2711 = vadd.f32 %v1145, %v2710
    %v2712 = vpop.f32.mrb[0].mxu0
    %v2713 = vpop.f32.mrb[0].mxu0
    %v2714 = vadd.f32 %v1145, %v2713
    %v2715 = vpop.f32.mrb[0].mxu0
    %2716 = vmatprep.mubr.bf16.mxu0 0
    %2717 = vmatmul.mubr.bf16.gmra.mrb[0].mxu0 %v2628
    %v2718 = vpop.f32.mrb[0].mxu0
    %v2719 = vadd.f32 %v1145, %v2718
    %v2720 = vpop.f32.mrb[0].mxu0
    %v2721 = vpop.f32.mrb[0].mxu0
    %v2722 = vadd.f32 %v1145, %v2721
    %v2723 = vpop.f32.mrb[0].mxu0
    %2724 = vmatprep.mubr.bf16.mxu0 0
    %2725 = vmatmul.mubr.bf16.gmra.mrb[0].mxu0 %v2630
    %v2726 = vpop.f32.mrb[0].mxu0
    %v2727 = vadd.f32 %v1145, %v2726
    %v2728 = vpop.f32.mrb[0].mxu0
    %v2729 = vpop.f32.mrb[0].mxu0
    %v2730 = vadd.f32 %v1145, %v2729
    %v2731 = vpop.f32.mrb[0].mxu0
    %2732 = vmatprep.mubr.bf16.mxu0 0
    %2733 = vmatmul.mubr.bf16.gmra.mrb[0].mxu0 %v2632
    %v2734 = vpop.f32.mrb[0].mxu0
    %v2735 = vadd.f32 %v1145, %v2734
    %v2736 = vpop.f32.mrb[0].mxu0
    %v2737 = vpop.f32.mrb[0].mxu0
    %v2738 = vadd.f32 %v1145, %v2737
    %v2739 = vpop.f32.mrb[0].mxu0
    %2740 = vmatprep.mubr.bf16.mxu0 0
    %2741 = vmatmul.mubr.bf16.gmra.mrb[0].mxu0 %v2634
    %v2742 = vpop.f32.mrb[0].mxu0
    %v2743 = vadd.f32 %v1145, %v2742
    %v2744 = vpop.f32.mrb[0].mxu0
    %v2745 = vpop.f32.mrb[0].mxu0
    %v2746 = vadd.f32 %v1145, %v2745
    %v2747 = vpop.f32.mrb[0].mxu0
    %2748 = vmatprep.mubr.bf16.mxu0 0
    %2749 = vmatmul.mubr.bf16.gmra.mrb[0].mxu0 %v2636
    %v2750 = vpop.f32.mrb[0].mxu0
    %v2751 = vadd.f32 %v1145, %v2750
    %v2752 = vpop.f32.mrb[0].mxu0
    %v2753 = vpop.f32.mrb[0].mxu0
    %v2754 = vadd.f32 %v1145, %v2753
    %v2755 = vpop.f32.mrb[0].mxu0
    %2756 = vmatprep.mubr.bf16.mxu0 0
    %2757 = vmatmul.mubr.bf16.gmra.mrb[0].mxu0 %v2638
    %v2758 = vpop.f32.mrb[0].mxu0
    %v2759 = vadd.f32 %v1145, %v2758
    %v2760 = vpop.f32.mrb[0].mxu0
    %v2761 = vpop.f32.mrb[0].mxu0
    %v2762 = vadd.f32 %v1145, %v2761
    %v2763 = vpop.f32.mrb[0].mxu0
    %2764 = vmatprep.mubr.bf16.mxu0 0
    %2765 = vmatmul.mubr.bf16.gmra.mrb[0].mxu0 %v2640
    %v2766 = vpop.f32.mrb[0].mxu0
    %v2767 = vadd.f32 %v1145, %v2766
    %v2768 = vpop.f32.mrb[0].mxu0
    %v2769 = vpop.f32.mrb[0].mxu0
    %v2770 = vadd.f32 %v1145, %v2769
    %v2771 = vpop.f32.mrb[0].mxu0
    %2772 = vmatprep.mubr.bf16.mxu0 0
    %2773 = vmatmul.mubr.bf16.gmra.mrb[0].mxu0 %v2642
    %v2774 = vpop.f32.mrb[0].mxu0
    %v2775 = vadd.f32 %v1145, %v2774
    %v2776 = vpop.f32.mrb[0].mxu0
    %v2777 = vpop.f32.mrb[0].mxu0
    %v2778 = vadd.f32 %v1145, %v2777
    %v2779 = vpop.f32.mrb[0].mxu0
    %2780 = vmatprep.mubr.bf16.mxu0 0
    %2781 = vmatmul.mubr.bf16.gmra.mrb[0].mxu0 %v2644
    %v2782 = vpop.f32.mrb[0].mxu0
    %v2783 = vadd.f32 %v1145, %v2782
    %v2784 = vpop.f32.mrb[0].mxu0
    %v2785 = vpop.f32.mrb[0].mxu0
    %v2786 = vadd.f32 %v1145, %v2785
    %v2787 = vpop.f32.mrb[0].mxu0
    %2788 = vmatprep.mubr.bf16.mxu0 0
    %2789 = vmatmul.mubr.bf16.gmra.mrb[0].mxu0 %v2646
    %v2790 = vpop.f32.mrb[0].mxu0
    %v2791 = vadd.f32 %v1145, %v2790
    %v2792 = vpop.f32.mrb[0].mxu0
    %v2793 = vpop.f32.mrb[0].mxu0
    %v2794 = vadd.f32 %v1145, %v2793
    %v2795 = vpop.f32.mrb[0].mxu0
    %2796 = vmatprep.mubr.bf16.mxu0 0
    %2797 = vmatmul.mubr.bf16.gmra.mrb[0].mxu0 %v2648
    %v2798 = vpop.f32.mrb[0].mxu0
    %v2799 = vadd.f32 %v1145, %v2798
    %v2800 = vpop.f32.mrb[0].mxu0
    %v2801 = vpop.f32.mrb[0].mxu0
    %v2802 = vadd.f32 %v1145, %v2801
    %v2803 = vpop.f32.mrb[0].mxu0
    %2804 = vmatprep.mubr.bf16.mxu0 0
    %2805 = vmatmul.mubr.bf16.gmra.mrb[0].mxu0 %v2650
    %v2806 = vpop.f32.mrb[0].mxu0
    %v2807 = vadd.f32 %v1145, %v2806
    %v2808 = vpop.f32.mrb[0].mxu0
    %v2809 = vpop.f32.mrb[0].mxu0
    %v2810 = vadd.f32 %v1145, %v2809
    %v2811 = vpop.f32.mrb[0].mxu0
    %2812 = vdwg.mxu0
    %v2813 = vmax.f32 %v2687, 0.0
    %v2814 = vmax.f32 %v2690, 0.0
    %v2815 = vmax.f32 %v2695, 0.0
    %v2816 = vmax.f32 %v2698, 0.0
    %v2817 = vmax.f32 %v2703, 0.0
    %v2818 = vmax.f32 %v2706, 0.0
    %v2819 = vmax.f32 %v2711, 0.0
    %v2820 = vmax.f32 %v2714, 0.0
    %v2821 = vmax.f32 %v2719, 0.0
    %v2822 = vmax.f32 %v2722, 0.0
    %v2823 = vmax.f32 %v2727, 0.0
    %v2824 = vmax.f32 %v2730, 0.0
    %v2825 = vmax.f32 %v2735, 0.0
    %v2826 = vmax.f32 %v2738, 0.0
    %v2827 = vmax.f32 %v2743, 0.0
    %v2828 = vmax.f32 %v2746, 0.0
    %v2829 = vmax.f32 %v2751, 0.0
    %v2830 = vmax.f32 %v2754, 0.0
    %v2831 = vmax.f32 %v2759, 0.0
    %v2832 = vmax.f32 %v2762, 0.0
    %v2833 = vmax.f32 %v2767, 0.0
    %v2834 = vmax.f32 %v2770, 0.0
    %v2835 = vmax.f32 %v2775, 0.0
    %v2836 = vmax.f32 %v2778, 0.0
    %v2837 = vmax.f32 %v2783, 0.0
    %v2838 = vmax.f32 %v2786, 0.0
    %v2839 = vmax.f32 %v2791, 0.0
    %v2840 = vmax.f32 %v2794, 0.0
    %v2841 = vmax.f32 %v2799, 0.0
    %v2842 = vmax.f32 %v2802, 0.0
    %v2843 = vmax.f32 %v2807, 0.0
    %v2844 = vmax.f32 %v2810, 0.0
    %v2845 = vsel %vm910, %v2813, 0.0
    %v2846 = vsel %vm910, %v2814, 0.0
    %v2847 = vadd.f32 %v2845, %v2846
    %v2848 = vsel %vm910, %v2815, 0.0
    %v2849 = vadd.f32 %v2847, %v2848
    %v2850 = vsel %vm910, %v2816, 0.0
    %v2851 = vadd.f32 %v2849, %v2850
    %v2852 = vsel %vm910, %v2817, 0.0
    %v2853 = vadd.f32 %v2851, %v2852
    %v2854 = vsel %vm910, %v2818, 0.0
    %v2855 = vadd.f32 %v2853, %v2854
    %v2856 = vsel %vm910, %v2819, 0.0
    %v2857 = vadd.f32 %v2855, %v2856
    %v2858 = vsel %vm910, %v2820, 0.0
    %v2859 = vadd.f32 %v2857, %v2858
    %v2860 = vsel %vm910, %v2821, 0.0
    %v2861 = vadd.f32 %v2859, %v2860
    %v2862 = vsel %vm910, %v2822, 0.0
    %v2863 = vadd.f32 %v2861, %v2862
    %v2864 = vsel %vm910, %v2823, 0.0
    %v2865 = vadd.f32 %v2863, %v2864
    %v2866 = vsel %vm910, %v2824, 0.0
    %v2867 = vadd.f32 %v2865, %v2866
    %v2868 = vsel %vm910, %v2825, 0.0
    %v2869 = vadd.f32 %v2867, %v2868
    %v2870 = vsel %vm910, %v2826, 0.0
    %v2871 = vadd.f32 %v2869, %v2870
    %v2872 = vsel %vm910, %v2827, 0.0
    %v2873 = vadd.f32 %v2871, %v2872
    %v2874 = vsel %vm910, %v2828, 0.0
    %v2875 = vadd.f32 %v2873, %v2874
    %v2876 = vsel %vm910, %v2829, 0.0
    %v2877 = vadd.f32 %v2875, %v2876
    %v2878 = vsel %vm910, %v2830, 0.0
    %v2879 = vadd.f32 %v2877, %v2878
    %v2880 = vsel %vm910, %v2831, 0.0
    %v2881 = vadd.f32 %v2879, %v2880
    %v2882 = vsel %vm910, %v2832, 0.0
    %v2883 = vadd.f32 %v2881, %v2882
    %v2884 = vsel %vm910, %v2833, 0.0
    %v2885 = vadd.f32 %v2883, %v2884
    %v2886 = vsel %vm910, %v2834, 0.0
    %v2887 = vadd.f32 %v2885, %v2886
    %v2888 = vsel %vm910, %v2835, 0.0
    %v2889 = vadd.f32 %v2887, %v2888
    %v2890 = vsel %vm910, %v2836, 0.0
    %v2891 = vadd.f32 %v2889, %v2890
    %v2892 = vsel %vm910, %v2837, 0.0
    %v2893 = vadd.f32 %v2891, %v2892
    %v2894 = vsel %vm910, %v2838, 0.0
    %v2895 = vadd.f32 %v2893, %v2894
    %v2896 = vsel %vm910, %v2839, 0.0
    %v2897 = vadd.f32 %v2895, %v2896
    %v2898 = vsel %vm910, %v2840, 0.0
    %v2899 = vadd.f32 %v2897, %v2898
    %v2900 = vsel %vm910, %v2841, 0.0
    %v2901 = vadd.f32 %v2899, %v2900
    %v2902 = vsel %vm910, %v2842, 0.0
    %v2903 = vadd.f32 %v2901, %v2902
    %v2904 = vsel %vm910, %v2843, 0.0
    %v2905 = vadd.f32 %v2903, %v2904
    %v2906 = vsel %vm910, %v2844, 0.0
    %v2907 = vadd.f32 %v2905, %v2906
    %v2908 = vrot.slane %v2907, 4
    %v2909 = vadd.f32 %v2907, %v2908
    %v2910 = vrot.slane %v2909, 2
    %v2911 = vadd.f32 %v2909, %v2910
    %v2912 = vrot.slane %v2911, 1
    %v2913 = vadd.f32 %v2911, %v2912
    %v2914 = vadd.f32 %v1461, %v2913
    %v2915 = vmul.f32 %v2813, %v2813
    %v2916 = vmul.f32 %v2814, %v2814
    %v2917 = vmul.f32 %v2815, %v2815
    %v2918 = vmul.f32 %v2816, %v2816
    %v2919 = vmul.f32 %v2817, %v2817
    %v2920 = vmul.f32 %v2818, %v2818
    %v2921 = vmul.f32 %v2819, %v2819
    %v2922 = vmul.f32 %v2820, %v2820
    %v2923 = vmul.f32 %v2821, %v2821
    %v2924 = vmul.f32 %v2822, %v2822
    %v2925 = vmul.f32 %v2823, %v2823
    %v2926 = vmul.f32 %v2824, %v2824
    %v2927 = vmul.f32 %v2825, %v2825
    %v2928 = vmul.f32 %v2826, %v2826
    %v2929 = vmul.f32 %v2827, %v2827
    %v2930 = vmul.f32 %v2828, %v2828
    %v2931 = vmul.f32 %v2829, %v2829
    %v2932 = vmul.f32 %v2830, %v2830
    %v2933 = vmul.f32 %v2831, %v2831
    %v2934 = vmul.f32 %v2832, %v2832
    %v2935 = vmul.f32 %v2833, %v2833
    %v2936 = vmul.f32 %v2834, %v2834
    %v2937 = vmul.f32 %v2835, %v2835
    %v2938 = vmul.f32 %v2836, %v2836
    %v2939 = vmul.f32 %v2837, %v2837
    %v2940 = vmul.f32 %v2838, %v2838
    %v2941 = vmul.f32 %v2839, %v2839
    %v2942 = vmul.f32 %v2840, %v2840
    %v2943 = vmul.f32 %v2841, %v2841
    %v2944 = vmul.f32 %v2842, %v2842
    %v2945 = vmul.f32 %v2843, %v2843
    %v2946 = vmul.f32 %v2844, %v2844
    %v2947 = vsel %vm910, %v2915, 0.0
    %v2948 = vsel %vm910, %v2916, 0.0
    %v2949 = vadd.f32 %v2947, %v2948
    %v2950 = vsel %vm910, %v2917, 0.0
    %v2951 = vadd.f32 %v2949, %v2950
    %v2952 = vsel %vm910, %v2918, 0.0
    %v2953 = vadd.f32 %v2951, %v2952
    %v2954 = vsel %vm910, %v2919, 0.0
    %v2955 = vadd.f32 %v2953, %v2954
    %v2956 = vsel %vm910, %v2920, 0.0
    %v2957 = vadd.f32 %v2955, %v2956
    %v2958 = vsel %vm910, %v2921, 0.0
    %v2959 = vadd.f32 %v2957, %v2958
    %v2960 = vsel %vm910, %v2922, 0.0
    %v2961 = vadd.f32 %v2959, %v2960
    %v2962 = vsel %vm910, %v2923, 0.0
    %v2963 = vadd.f32 %v2961, %v2962
    %v2964 = vsel %vm910, %v2924, 0.0
    %v2965 = vadd.f32 %v2963, %v2964
    %v2966 = vsel %vm910, %v2925, 0.0
    %v2967 = vadd.f32 %v2965, %v2966
    %v2968 = vsel %vm910, %v2926, 0.0
    %v2969 = vadd.f32 %v2967, %v2968
    %v2970 = vsel %vm910, %v2927, 0.0
    %v2971 = vadd.f32 %v2969, %v2970
    %v2972 = vsel %vm910, %v2928, 0.0
    %v2973 = vadd.f32 %v2971, %v2972
    %v2974 = vsel %vm910, %v2929, 0.0
    %v2975 = vadd.f32 %v2973, %v2974
    %v2976 = vsel %vm910, %v2930, 0.0
    %v2977 = vadd.f32 %v2975, %v2976
    %v2978 = vsel %vm910, %v2931, 0.0
    %v2979 = vadd.f32 %v2977, %v2978
    %v2980 = vsel %vm910, %v2932, 0.0
    %v2981 = vadd.f32 %v2979, %v2980
    %v2982 = vsel %vm910, %v2933, 0.0
    %v2983 = vadd.f32 %v2981, %v2982
    %v2984 = vsel %vm910, %v2934, 0.0
    %v2985 = vadd.f32 %v2983, %v2984
    %v2986 = vsel %vm910, %v2935, 0.0
    %v2987 = vadd.f32 %v2985, %v2986
    %v2988 = vsel %vm910, %v2936, 0.0
    %v2989 = vadd.f32 %v2987, %v2988
    %v2990 = vsel %vm910, %v2937, 0.0
    %v2991 = vadd.f32 %v2989, %v2990
    %v2992 = vsel %vm910, %v2938, 0.0
    %v2993 = vadd.f32 %v2991, %v2992
    %v2994 = vsel %vm910, %v2939, 0.0
    %v2995 = vadd.f32 %v2993, %v2994
    %v2996 = vsel %vm910, %v2940, 0.0
    %v2997 = vadd.f32 %v2995, %v2996
    %v2998 = vsel %vm910, %v2941, 0.0
    %v2999 = vadd.f32 %v2997, %v2998
    %v3000 = vsel %vm910, %v2942, 0.0
    %v3001 = vadd.f32 %v2999, %v3000
    %v3002 = vsel %vm910, %v2943, 0.0
    %v3003 = vadd.f32 %v3001, %v3002
    %v3004 = vsel %vm910, %v2944, 0.0
    %v3005 = vadd.f32 %v3003, %v3004
    %v3006 = vsel %vm910, %v2945, 0.0
    %v3007 = vadd.f32 %v3005, %v3006
    %v3008 = vsel %vm910, %v2946, 0.0
    %v3009 = vadd.f32 %v3007, %v3008
    %v3010 = vrot.slane %v3009, 4
    %v3011 = vadd.f32 %v3009, %v3010
    %v3012 = vrot.slane %v3011, 2
    %v3013 = vadd.f32 %v3011, %v3012
    %v3014 = vrot.slane %v3013, 1
    %v3015 = vadd.f32 %v3013, %v3014
    %v3016 = vadd.f32 %v1563, %v3015
    %v3017 = vrcp.pop 512.0
    %v3018 = vmul.f32 %v2914, %v3017
    %v3019 = vmul.f32 %v3016, %v3017
    %v3020 = vmul.f32 %v3018, %v3018
    %v3021 = vsub.f32 %v3019, %v3020
    %v3022 = vmax.f32 %v3021, 0.0
    %v3023 = vld [vmem:[%s3] sm:$0x1]
    %v3024 = vadd.f32 %v3022, 1e-05
    %v3025 = vrsqrt.pop %v3024
    %v3026 = vmul.f32 %v3023, %v3025
    %v3027 = vld [vmem:[%s4] sm:$0x1]
    %v3028 = vmul.f32 %v3018, %v3026
    %v3029 = vsub.f32 %v3027, %v3028
    %v3031 = vlaneseq
    %v3032 = vshrl.u32 %v3031, 7
    %v3033 = vsub.s32 0, %v3032
    %v3034 = vrot.slane %v3026, %v3033
    %v3036 = vmul.f32 %v1360, %v3034
    %v3037 = vmul.f32 %v1361, %v3034
    %v3038 = vmul.f32 %v1362, %v3034
    %v3039 = vmul.f32 %v1363, %v3034
    %v3040 = vmul.f32 %v1364, %v3034
    %v3041 = vmul.f32 %v1365, %v3034
    %v3042 = vmul.f32 %v1366, %v3034
    %v3043 = vmul.f32 %v1367, %v3034
    %v3044 = vmul.f32 %v1368, %v3034
    %v3045 = vmul.f32 %v1369, %v3034
    %v3046 = vmul.f32 %v1370, %v3034
    %v3047 = vmul.f32 %v1371, %v3034
    %v3048 = vmul.f32 %v1372, %v3034
    %v3049 = vmul.f32 %v1373, %v3034
    %v3050 = vmul.f32 %v1374, %v3034
    %v3051 = vmul.f32 %v1375, %v3034
    %v3052 = vmul.f32 %v1376, %v3034
    %v3053 = vmul.f32 %v1377, %v3034
    %v3054 = vmul.f32 %v1378, %v3034
    %v3055 = vmul.f32 %v1379, %v3034
    %v3056 = vmul.f32 %v1380, %v3034
    %v3057 = vmul.f32 %v1381, %v3034
    %v3058 = vmul.f32 %v1382, %v3034
    %v3059 = vmul.f32 %v1383, %v3034
    %v3060 = vmul.f32 %v1384, %v3034
    %v3061 = vmul.f32 %v1385, %v3034
    %v3062 = vmul.f32 %v1386, %v3034
    %v3063 = vmul.f32 %v1387, %v3034
    %v3064 = vmul.f32 %v1388, %v3034
    %v3065 = vmul.f32 %v1389, %v3034
    %v3066 = vmul.f32 %v1390, %v3034
    %v3067 = vmul.f32 %v1391, %v3034
    %v3069 = vlaneseq
    %v3070 = vshrl.u32 %v3069, 7
    %v3071 = vsub.s32 0, %v3070
    %v3072 = vrot.slane %v3029, %v3071
    %v3074 = vadd.f32 %v3036, %v3072
    %v3075 = vadd.f32 %v3037, %v3072
    %v3076 = vadd.f32 %v3038, %v3072
    %v3077 = vadd.f32 %v3039, %v3072
    %v3078 = vadd.f32 %v3040, %v3072
    %v3079 = vadd.f32 %v3041, %v3072
    %v3080 = vadd.f32 %v3042, %v3072
    %v3081 = vadd.f32 %v3043, %v3072
    %v3082 = vadd.f32 %v3044, %v3072
    %v3083 = vadd.f32 %v3045, %v3072
    %v3084 = vadd.f32 %v3046, %v3072
    %v3085 = vadd.f32 %v3047, %v3072
    %v3086 = vadd.f32 %v3048, %v3072
    %v3087 = vadd.f32 %v3049, %v3072
    %v3088 = vadd.f32 %v3050, %v3072
    %v3089 = vadd.f32 %v3051, %v3072
    %v3090 = vadd.f32 %v3052, %v3072
    %v3091 = vadd.f32 %v3053, %v3072
    %v3092 = vadd.f32 %v3054, %v3072
    %v3093 = vadd.f32 %v3055, %v3072
    %v3094 = vadd.f32 %v3056, %v3072
    %v3095 = vadd.f32 %v3057, %v3072
    %v3096 = vadd.f32 %v3058, %v3072
    %v3097 = vadd.f32 %v3059, %v3072
    %v3098 = vadd.f32 %v3060, %v3072
    %v3099 = vadd.f32 %v3061, %v3072
    %v3100 = vadd.f32 %v3062, %v3072
    %v3101 = vadd.f32 %v3063, %v3072
    %v3102 = vadd.f32 %v3064, %v3072
    %v3103 = vadd.f32 %v3065, %v3072
    %v3104 = vadd.f32 %v3066, %v3072
    %v3105 = vadd.f32 %v3067, %v3072
    %3106 = vxpose.xlu0.b32.start [1/16] %v3074, 128
    %3107 = vxpose.xlu0.b32.cont [2/16] %v3075, 128
    %3108 = vxpose.xlu0.b32.cont [3/16] %v3076, 128
    %3109 = vxpose.xlu0.b32.cont [4/16] %v3077, 128
    %3110 = vxpose.xlu0.b32.cont [5/16] %v3078, 128
    %3111 = vxpose.xlu0.b32.cont [6/16] %v3079, 128
    %3112 = vxpose.xlu0.b32.cont [7/16] %v3080, 128
    %3113 = vxpose.xlu0.b32.cont [8/16] %v3081, 128
    %3114 = vxpose.xlu0.b32.cont [9/16] %v3082, 128
    %3115 = vxpose.xlu0.b32.cont [10/16] %v3083, 128
    %3116 = vxpose.xlu0.b32.cont [11/16] %v3084, 128
    %3117 = vxpose.xlu0.b32.cont [12/16] %v3085, 128
    %3118 = vxpose.xlu0.b32.cont [13/16] %v3086, 128
    %3119 = vxpose.xlu0.b32.cont [14/16] %v3087, 128
    %3120 = vxpose.xlu0.b32.cont [15/16] %v3088, 128
    %3121 = vxpose.xlu0.b32.end [16/16] %v3089, 128
    %v3122 = vpop.trf.xlu0
    %v3123 = vpop.trf.xlu0
    %v3124 = vpop.trf.xlu0
    %v3125 = vpop.trf.xlu0
    %v3126 = vpop.trf.xlu0
    %v3127 = vpop.trf.xlu0
    %v3128 = vpop.trf.xlu0
    %v3129 = vpop.trf.xlu0
    %v3130 = vpop.trf.xlu0
    %v3131 = vpop.trf.xlu0
    %v3132 = vpop.trf.xlu0
    %v3133 = vpop.trf.xlu0
    %v3134 = vpop.trf.xlu0
    %v3135 = vpop.trf.xlu0
    %v3136 = vpop.trf.xlu0
    %v3137 = vpop.trf.xlu0
    %3138 = vxpose.xlu0.b32.start [1/16] %v3090, 128
    %3139 = vxpose.xlu0.b32.cont [2/16] %v3091, 128
    %3140 = vxpose.xlu0.b32.cont [3/16] %v3092, 128
    %3141 = vxpose.xlu0.b32.cont [4/16] %v3093, 128
    %3142 = vxpose.xlu0.b32.cont [5/16] %v3094, 128
    %3143 = vxpose.xlu0.b32.cont [6/16] %v3095, 128
    %3144 = vxpose.xlu0.b32.cont [7/16] %v3096, 128
    %3145 = vxpose.xlu0.b32.cont [8/16] %v3097, 128
    %3146 = vxpose.xlu0.b32.cont [9/16] %v3098, 128
    %3147 = vxpose.xlu0.b32.cont [10/16] %v3099, 128
    %3148 = vxpose.xlu0.b32.cont [11/16] %v3100, 128
    %3149 = vxpose.xlu0.b32.cont [12/16] %v3101, 128
    %3150 = vxpose.xlu0.b32.cont [13/16] %v3102, 128
    %3151 = vxpose.xlu0.b32.cont [14/16] %v3103, 128
    %3152 = vxpose.xlu0.b32.cont [15/16] %v3104, 128
    %3153 = vxpose.xlu0.b32.end [16/16] %v3105, 128
    %v3154 = vpop.trf.xlu0
    %v3155 = vpop.trf.xlu0
    %v3156 = vpop.trf.xlu0
    %v3157 = vpop.trf.xlu0
    %v3158 = vpop.trf.xlu0
    %v3159 = vpop.trf.xlu0
    %v3160 = vpop.trf.xlu0
    %v3161 = vpop.trf.xlu0
    %v3162 = vpop.trf.xlu0
    %v3163 = vpop.trf.xlu0
    %v3164 = vpop.trf.xlu0
    %v3165 = vpop.trf.xlu0
    %v3166 = vpop.trf.xlu0
    %v3167 = vpop.trf.xlu0
    %v3168 = vpop.trf.xlu0
    %v3169 = vpop.trf.xlu0
    %3170 = vst [vmem:[#allocation2] sm:$0xff] %v3122
    %3171 = vst [vmem:[#allocation2 + $0x8] sm:$0xff] %v3154
    %v3172 = vmul.f32 %v2813, %v3034
    %v3173 = vmul.f32 %v2814, %v3034
    %v3174 = vmul.f32 %v2815, %v3034
    %v3175 = vmul.f32 %v2816, %v3034
    %v3176 = vmul.f32 %v2817, %v3034
    %v3177 = vmul.f32 %v2818, %v3034
    %v3178 = vmul.f32 %v2819, %v3034
    %v3179 = vmul.f32 %v2820, %v3034
    %v3180 = vmul.f32 %v2821, %v3034
    %v3181 = vmul.f32 %v2822, %v3034
    %v3182 = vmul.f32 %v2823, %v3034
    %v3183 = vmul.f32 %v2824, %v3034
    %v3184 = vmul.f32 %v2825, %v3034
    %v3185 = vmul.f32 %v2826, %v3034
    %v3186 = vmul.f32 %v2827, %v3034
    %v3187 = vmul.f32 %v2828, %v3034
    %v3188 = vmul.f32 %v2829, %v3034
    %v3189 = vmul.f32 %v2830, %v3034
    %v3190 = vmul.f32 %v2831, %v3034
    %v3191 = vmul.f32 %v2832, %v3034
    %v3192 = vmul.f32 %v2833, %v3034
    %v3193 = vmul.f32 %v2834, %v3034
    %v3194 = vmul.f32 %v2835, %v3034
    %v3195 = vmul.f32 %v2836, %v3034
    %v3196 = vmul.f32 %v2837, %v3034
    %v3197 = vmul.f32 %v2838, %v3034
    %v3198 = vmul.f32 %v2839, %v3034
    %v3199 = vmul.f32 %v2840, %v3034
    %v3200 = vmul.f32 %v2841, %v3034
    %v3201 = vmul.f32 %v2842, %v3034
    %v3202 = vmul.f32 %v2843, %v3034
    %v3203 = vmul.f32 %v2844, %v3034
    %v3204 = vadd.f32 %v3172, %v3072
    %v3205 = vadd.f32 %v3173, %v3072
    %v3206 = vadd.f32 %v3174, %v3072
    %v3207 = vadd.f32 %v3175, %v3072
    %v3208 = vadd.f32 %v3176, %v3072
    %v3209 = vadd.f32 %v3177, %v3072
    %v3210 = vadd.f32 %v3178, %v3072
    %v3211 = vadd.f32 %v3179, %v3072
    %v3212 = vadd.f32 %v3180, %v3072
    %v3213 = vadd.f32 %v3181, %v3072
    %v3214 = vadd.f32 %v3182, %v3072
    %v3215 = vadd.f32 %v3183, %v3072
    %v3216 = vadd.f32 %v3184, %v3072
    %v3217 = vadd.f32 %v3185, %v3072
    %v3218 = vadd.f32 %v3186, %v3072
    %v3219 = vadd.f32 %v3187, %v3072
    %v3220 = vadd.f32 %v3188, %v3072
    %v3221 = vadd.f32 %v3189, %v3072
    %v3222 = vadd.f32 %v3190, %v3072
    %v3223 = vadd.f32 %v3191, %v3072
    %v3224 = vadd.f32 %v3192, %v3072
    %v3225 = vadd.f32 %v3193, %v3072
    %v3226 = vadd.f32 %v3194, %v3072
    %v3227 = vadd.f32 %v3195, %v3072
    %v3228 = vadd.f32 %v3196, %v3072
    %v3229 = vadd.f32 %v3197, %v3072
    %v3230 = vadd.f32 %v3198, %v3072
    %v3231 = vadd.f32 %v3199, %v3072
    %v3232 = vadd.f32 %v3200, %v3072
    %v3233 = vadd.f32 %v3201, %v3072
    %v3234 = vadd.f32 %v3202, %v3072
    %v3235 = vadd.f32 %v3203, %v3072
    %3236 = vxpose.xlu0.b32.start [1/16] %v3204, 128
    %3237 = vxpose.xlu0.b32.cont [2/16] %v3205, 128
    %3238 = vxpose.xlu0.b32.cont [3/16] %v3206, 128
    %3239 = vxpose.xlu0.b32.cont [4/16] %v3207, 128
    %3240 = vxpose.xlu0.b32.cont [5/16] %v3208, 128
    %3241 = vxpose.xlu0.b32.cont [6/16] %v3209, 128
    %3242 = vxpose.xlu0.b32.cont [7/16] %v3210, 128
    %3243 = vxpose.xlu0.b32.cont [8/16] %v3211, 128
    %3244 = vxpose.xlu0.b32.cont [9/16] %v3212, 128
    %3245 = vxpose.xlu0.b32.cont [10/16] %v3213, 128
    %3246 = vxpose.xlu0.b32.cont [11/16] %v3214, 128
    %3247 = vxpose.xlu0.b32.cont [12/16] %v3215, 128
    %3248 = vxpose.xlu0.b32.cont [13/16] %v3216, 128
    %3249 = vxpose.xlu0.b32.cont [14/16] %v3217, 128
    %3250 = vxpose.xlu0.b32.cont [15/16] %v3218, 128
    %3251 = vxpose.xlu0.b32.end [16/16] %v3219, 128
    %v3252 = vpop.trf.xlu0
    %v3253 = vpop.trf.xlu0
    %v3254 = vpop.trf.xlu0
    %v3255 = vpop.trf.xlu0
    %v3256 = vpop.trf.xlu0
    %v3257 = vpop.trf.xlu0
    %v3258 = vpop.trf.xlu0
    %v3259 = vpop.trf.xlu0
    %v3260 = vpop.trf.xlu0
    %v3261 = vpop.trf.xlu0
    %v3262 = vpop.trf.xlu0
    %v3263 = vpop.trf.xlu0
    %v3264 = vpop.trf.xlu0
    %v3265 = vpop.trf.xlu0
    %v3266 = vpop.trf.xlu0
    %v3267 = vpop.trf.xlu0
    %3268 = vxpose.xlu0.b32.start [1/16] %v3220, 128
    %3269 = vxpose.xlu0.b32.cont [2/16] %v3221, 128
    %3270 = vxpose.xlu0.b32.cont [3/16] %v3222, 128
    %3271 = vxpose.xlu0.b32.cont [4/16] %v3223, 128
    %3272 = vxpose.xlu0.b32.cont [5/16] %v3224, 128
    %3273 = vxpose.xlu0.b32.cont [6/16] %v3225, 128
    %3274 = vxpose.xlu0.b32.cont [7/16] %v3226, 128
    %3275 = vxpose.xlu0.b32.cont [8/16] %v3227, 128
    %3276 = vxpose.xlu0.b32.cont [9/16] %v3228, 128
    %3277 = vxpose.xlu0.b32.cont [10/16] %v3229, 128
    %3278 = vxpose.xlu0.b32.cont [11/16] %v3230, 128
    %3279 = vxpose.xlu0.b32.cont [12/16] %v3231, 128
    %3280 = vxpose.xlu0.b32.cont [13/16] %v3232, 128
    %3281 = vxpose.xlu0.b32.cont [14/16] %v3233, 128
    %3282 = vxpose.xlu0.b32.cont [15/16] %v3234, 128
    %3283 = vxpose.xlu0.b32.end [16/16] %v3235, 128
    %v3284 = vpop.trf.xlu0
    %v3285 = vpop.trf.xlu0
    %v3286 = vpop.trf.xlu0
    %v3287 = vpop.trf.xlu0
    %v3288 = vpop.trf.xlu0
    %v3289 = vpop.trf.xlu0
    %v3290 = vpop.trf.xlu0
    %v3291 = vpop.trf.xlu0
    %v3292 = vpop.trf.xlu0
    %v3293 = vpop.trf.xlu0
    %v3294 = vpop.trf.xlu0
    %v3295 = vpop.trf.xlu0
    %v3296 = vpop.trf.xlu0
    %v3297 = vpop.trf.xlu0
    %v3298 = vpop.trf.xlu0
    %v3299 = vpop.trf.xlu0
    %s3300 = scalar_lea.vmem [#allocation2], 16
    %3301 = vst [vmem:[%s3300] sm:$0xff] %v3252
    %3302 = vst [vmem:[%s3300 + $0x8] sm:$0xff] %v3284
    // Predicated region
    $region22: #{tpu_custom_call.1} parent=1 // pred_check
      _
    $region23: #{tpu_custom_call.1} parent=1 // pred_check_branch
      %3304 = sbr.rel (0) target = $region25
    $region24: #{tpu_custom_call.1} parent=1 // pred_region
      %s3306 = ssub.s32 512, 512
      %3307 = vsyncadd [#allocation3], %s3306
      %s3308 = sshll.u32 [#allocation2], 4
      %s3309 = int_to_ptr.vmem [resolvable:$true] %s3308
      %3314 = dma.vmem_to_hbm [thread:$0]  %s3309, 512, %s5, [#allocation3], 256, 256, 16
    $region25: #{tpu_custom_call.1} parent=1 // pred_fallthru
      _
    // Predicated region
    $region26: #{tpu_custom_call.1} parent=1 // pred_check
      _
    $region27: #{tpu_custom_call.1} parent=1 // pred_check_branch
      %3316 = sbr.rel (0) target = $region29
    $region28: #{tpu_custom_call.1} parent=1 // pred_region
      %3317 = dma.done [#allocation3], 512
    $region29: #{tpu_custom_call.1} parent=1 // pred_fallthru
      _
    %3318 = vsyncpa [#allocation3], 1

</llo_original>
